<compile_context>
chip_gen: v6e
topology: v6e:2x2x1
jax: 0.10.0
libtpu: 0.0.40
codegen_flags: <defaults>
</compile_context>

<pallas_src>
import numpy as np
import jax
import jax.numpy as jnp
from jax import lax
from jax.experimental import pallas as pl
from jax.experimental.pallas import tpu as pltpu

PRIMITIVES = ["skip_connect", "sep_conv_3x3"]

# cell_arch rows: [branch_index, primitive_index], sorted by branch_index so the
# forward-pass traversal order matches the __init__ op-construction order.
CELL_ARCH = np.array(
    [[0, 1], [1, 0], [2, 1], [3, 0], [5, 1], [6, 0]], dtype=np.int32
)


# --------------------------------------------------------------------------
# Fused whole-cell kernel (one image per grid step).
# Layout inside the kernel: (channels, H*W)  — channels on sublanes, spatial
# on lanes (lane-dense: H*W is a multiple of 128).
# --------------------------------------------------------------------------
def _make_cell_kernel(B, H, W, cell_arch):
    branch_set = set(int(r[0]) for r in cell_arch)
    hw = H * W
    # Per-tap lane shift so that out[q] = x[q + off_t] under jnp.roll semantics
    # (out[j] = x[j - shift]), i.e. shift = -off_t, off_t = (dh-1)*W + (dw-1).
    shifts = []
    for dh in range(3):
        for dw_ in range(3):
            shifts.append((-((dh - 1) * W + (dw_ - 1))) % hw)

    def kernel(x0_ref, x1_ref,          # inputs  (C0, HW), (C1, HW)
               w0_ref, w1_ref,          # pre_preprocess / preprocess weights
               coeff_ref,               # (n_sep, 9, C, HW): tap * border mask
               pwk_ref,                 # pointwise weights  (n_sep, C, C)
               wd_ref,                  # dense_process weight (C, B*C)
               biases_ref,              # (3 + n_sep, C, 1): b0, b1, bd, pb_k...
               concat_ref,              # out (B*C, HW)
               dense_ref):              # out (C, HW)
        c = w1_ref.shape[0]
        m = x1_ref.shape[1]             # = H*W for this image

        # ---- fused ReLU -> 1x1 conv (BN folded) -> +bias ----------------------
        def rcb(x, w_r, b):
            xr = jnp.maximum(x, 0.0)
            return jnp.dot(w_r[...], xr, preferred_element_type=jnp.float32) + b

        # ---- fused ReLU -> depthwise 3x3 (roll+FMA) -> pointwise 1x1 -> +bias --
        def sep3x3(x, k):
            xr = jnp.maximum(x, 0.0)
            ck = coeff_ref[k]            # (9, C, m) hoisted once per sep conv
            acc = jnp.zeros((c, m), jnp.float32)
            for t in range(9):
                src = xr if t == 4 else pltpu.roll(xr, shifts[t], axis=1)
                acc = acc + src * ck[t]
            return (jnp.dot(pwk_ref[k], acc, preferred_element_type=jnp.float32)
                    + biases_ref[3 + k])

        s1 = rcb(x1_ref[...], w1_ref, biases_ref[1])
        s0 = rcb(x0_ref[...], w0_ref, biases_ref[0])

        states = [s0, s1]
        offset = 0
        ops_index = 0
        sep_idx = 0
        for _ in range(B):
            new_states = []
            for j, hcur in enumerate(states):
                if (offset + j) in branch_set:
                    prim = PRIMITIVES[int(cell_arch[ops_index][1])]
                    if prim == "skip_connect":
                        ns = hcur
                    else:
                        ns = sep3x3(hcur, sep_idx)
                        sep_idx += 1
                    new_states.append(ns)
                    ops_index += 1
            acc = new_states[0]
            for extra in new_states[1:]:          # n-ary in-register sum
                acc = acc + extra
            offset += len(states)
            states.append(acc)

        # concat + dense_process fused: one (C, B*C) x (B*C, m) matmul.
        cat = jnp.concatenate(states[-B:], axis=0)        # (B*C, m)
        concat_ref[...] = cat
        dense_ref[...] = (jnp.dot(wd_ref[...], jnp.maximum(cat, 0.0),
                                  preferred_element_type=jnp.float32)
                          + biases_ref[2])

    return kernel


# --------------------------------------------------------------------------
# Wrapper: NCHW (PyTorch layout) in/out, single fused pallas_call.
# --------------------------------------------------------------------------
def cell_forward(prev_prev_nchw, prev_nchw, params, cell_arch=CELL_ARCH, b=3):
    n, c0, h, w = prev_prev_nchw.shape
    _, c1, _, _ = prev_nchw.shape
    c = params["preprocess"]["w"].shape[0]
    hw = h * w
    assert hw % 128 == 0, "per-image spatial size must be a multiple of 128 lanes"
    assert c % 8 == 0, "C_out must be a multiple of 8 sublanes"

    # layout plumbing (wrapper-side): NCHW -> (C, N*H*W)
    x0 = jnp.transpose(prev_prev_nchw, (1, 0, 2, 3)).reshape(c0, n * hw)
    x1 = jnp.transpose(prev_nchw, (1, 0, 2, 3)).reshape(c1, n * hw)

    sep_params = [p for p in params["ops"] if p is not None]
    n_sep = len(sep_params)

    # Per-tap destination-validity masks (zero padding at image borders),
    # combined with the depthwise tap weights into one lane-dense coefficient
    # tensor: coeff[k, t, c, q] = dw[k, c, dh, dw] * valid[t, q].
    qs = np.arange(hw)
    hh, ww = qs // w, qs % w
    masks = []
    for dh in range(3):
        for dw_ in range(3):
            hs, ws = hh + dh - 1, ww + dw_ - 1
            masks.append(((hs >= 0) & (hs < h) & (ws >= 0) & (ws < w))
                         .astype(np.float32))
    masks = jnp.asarray(np.stack(masks))                          # (9, HW)
    coeff = jnp.stack([
        p["dw"].reshape(c, 9).T[:, :, None] * masks[:, None, :]   # (9, C, HW)
        for p in sep_params])                                     # (n_sep, 9, C, HW)

    pwk = jnp.stack([p["pw"] for p in sep_params])                # (n_sep, C, C)
    w0 = params["pre_preprocess"]["w"]
    w1 = params["preprocess"]["w"]
    wd = params["dense_process"]["w"]                             # (C, B*C) unsplit
    biases = jnp.stack(
        [params["pre_preprocess"]["b"].reshape(c, 1),
         params["preprocess"]["b"].reshape(c, 1),
         params["dense_process"]["b"].reshape(c, 1)]
        + [p["b"].reshape(c, 1) for p in sep_params])             # (3+n_sep, C, 1)

    kernel = _make_cell_kernel(b, h, w, cell_arch)

    def full(a):  # whole-array block, constant across the grid
        return pl.BlockSpec(a.shape, lambda i, _nd=a.ndim: (0,) * _nd)

    flops = n * hw * (2 * c * (c0 + c1)
                      + n_sep * (2 * 9 * c + 2 * c * c)
                      + 2 * c * (b * c))
    bytes_accessed = 4 * (x0.size + x1.size + coeff.size + pwk.size + wd.size
                          + w0.size + w1.size + biases.size
                          + (b * c + c) * n * hw)
    cost = pl.CostEstimate(flops=flops, transcendentals=0,
                           bytes_accessed=bytes_accessed)

    concat_cm, dense_cm = pl.pallas_call(
        kernel,
        out_shape=(jax.ShapeDtypeStruct((b * c, n * hw), jnp.float32),
                   jax.ShapeDtypeStruct((c, n * hw), jnp.float32)),
        grid=(n,),
        in_specs=[
            pl.BlockSpec((c0, hw), lambda i: (0, i)),
            pl.BlockSpec((c1, hw), lambda i: (0, i)),
            full(w0), full(w1), full(coeff), full(pwk), full(wd), full(biases),
        ],
        out_specs=(pl.BlockSpec((b * c, hw), lambda i: (0, i)),
                   pl.BlockSpec((c, hw), lambda i: (0, i))),
        compiler_params=pltpu.CompilerParams(dimension_semantics=("parallel",)),
        cost_estimate=cost,
    )(x0, x1, w0, w1, coeff, pwk, wd, biases)

    concat = jnp.transpose(concat_cm.reshape(b * c, n, h, w), (1, 0, 2, 3))
    dense = jnp.transpose(dense_cm.reshape(c, n, h, w), (1, 0, 2, 3))
    return prev_nchw, concat, dense


# --------------------------------------------------------------------------
# Parameter init (deterministic, synthetic; BN folded at init time)
# --------------------------------------------------------------------------
def _fold_bn(w, gamma, beta, mean, var, eps=1e-5):
    scale = gamma / jnp.sqrt(var + eps)
    return w * scale[:, None], beta - mean * scale


def init_rcb(key, cin, cout):
    k1, k2, k3, k4, k5 = jax.random.split(key, 5)
    w = jax.random.normal(k1, (cout, cin), jnp.float32) / np.sqrt(cin)
    gamma = 1.0 + 0.1 * jax.random.normal(k2, (cout,), jnp.float32)
    beta = 0.1 * jax.random.normal(k3, (cout,), jnp.float32)
    mean = 0.1 * jax.random.normal(k4, (cout,), jnp.float32)
    var = 1.0 + 0.1 * jnp.abs(jax.random.normal(k5, (cout,), jnp.float32))
    wf, bf = _fold_bn(w, gamma, beta, mean, var)
    return {"w": wf, "b": bf}


def init_sep(key, c):
    k1, k2 = jax.random.split(key)
    dw = jax.random.normal(k1, (c, 3, 3), jnp.float32) / 3.0   # depthwise (unfolded)
    rcb = init_rcb(k2, c, c)                                   # pointwise (BN folded)
    return {"dw": dw, "pw": rcb["w"], "b": rcb["b"]}


def init_cell_params(key, prev_prev_c, prev_c, c_out, b, cell_arch):
    keys = jax.random.split(key, 3 + len(cell_arch))
    params = {
        "preprocess": init_rcb(keys[0], prev_c, c_out),
        "pre_preprocess": init_rcb(keys[1], prev_prev_c, c_out),
        "dense_process": init_rcb(keys[2], b * c_out, c_out),
        "ops": [],
    }
    for idx in range(len(cell_arch)):
        prim = PRIMITIVES[int(cell_arch[idx][1])]
        params["ops"].append(init_sep(keys[3 + idx], c_out)
                             if prim == "sep_conv_3x3" else None)
    return params


# --------------------------------------------------------------------------
# Pure-JAX reference (NCHW) for correctness check
# --------------------------------------------------------------------------
def _rcb_ref(x, w, bias):
    y = jnp.einsum("nchw,dc->ndhw", jnp.maximum(x, 0.0), w)
    return y + bias[None, :, None, None]


def _sep_ref(x, dw, pw, bias):
    n, c, h, w = x.shape
    xr = jnp.maximum(x, 0.0)
    xp = jnp.pad(xr, ((0, 0), (0, 0), (1, 1), (1, 1)))
    acc = jnp.zeros_like(xr)
    for dh in range(3):
        for dwi in range(3):
            acc = acc + xp[:, :, dh:dh + h, dwi:dwi + w] * dw[None, :, dh, dwi, None, None]
    return jnp.einsum("nchw,dc->ndhw", acc, pw) + bias[None, :, None, None]


def cell_forward_ref(prev_prev, prev, params, cell_arch=CELL_ARCH, b=3):
    s1 = _rcb_ref(prev, params["preprocess"]["w"], params["preprocess"]["b"])
    s0 = _rcb_ref(prev_prev, params["pre_preprocess"]["w"], params["pre_preprocess"]["b"])
    states = [s0, s1]
    branch_set = set(int(r[0]) for r in cell_arch)
    offset = 0
    ops_index = 0
    for _ in range(b):
        new_states = []
        for j, hcur in enumerate(states):
            if (offset + j) in branch_set:
                prim = PRIMITIVES[int(cell_arch[ops_index][1])]
                if prim == "skip_connect":
                    ns = hcur
                else:
                    p = params["ops"][ops_index]
                    ns = _sep_ref(hcur, p["dw"], p["pw"], p["b"])
                new_states.append(ns)
                ops_index += 1
        s = new_states[0]
        for extra in new_states[1:]:
            s = s + extra
        offset += len(states)
        states.append(s)
    concat = jnp.concatenate(states[-b:], axis=1)
    dense = _rcb_ref(concat, params["dense_process"]["w"], params["dense_process"]["b"])
    return prev, concat, dense


# --------------------------------------------------------------------------
if __name__ == "__main__":
    N, H, W = 2, 16, 16
    prev_prev_C, prev_C, C_out, B = 4, 6, 8, 3

    key = jax.random.PRNGKey(0)
    kx0, kx1, kp = jax.random.split(key, 3)
    # PyTorch-style NCHW inputs
    x0 = jax.random.normal(kx0, (N, prev_prev_C, H, W), jnp.float32)
    x1 = jax.random.normal(kx1, (N, prev_C, H, W), jnp.float32)

    params = init_cell_params(kp, prev_prev_C, prev_C, C_out, B, CELL_ARCH)

    outs = jax.block_until_ready(cell_forward(x0, x1, params, CELL_ARCH, B))
    ref = cell_forward_ref(x0, x1, params, CELL_ARCH, B)
    for got, want in zip(outs, ref):
        np.testing.assert_allclose(np.asarray(got), np.asarray(want),
                                   rtol=5e-4, atol=1e-3)

    print("KERNEL_OK")
</pallas_src>

<mosaic_0001>
module attributes {stable_mosaic.version = 11 : i64} {
  func.func @kernel(%arg0: i32, %arg1: memref<4x256xf32, #tpu.memory_space<vmem>>, %arg2: memref<6x256xf32, #tpu.memory_space<vmem>>, %arg3: memref<8x4xf32, #tpu.memory_space<vmem>>, %arg4: memref<8x6xf32, #tpu.memory_space<vmem>>, %arg5: memref<3x9x8x256xf32, #tpu.memory_space<vmem>>, %arg6: memref<3x8x8xf32, #tpu.memory_space<vmem>>, %arg7: memref<8x24xf32, #tpu.memory_space<vmem>>, %arg8: memref<6x8x1xf32, #tpu.memory_space<vmem>>, %arg9: memref<24x256xf32, #tpu.memory_space<vmem>>, %arg10: memref<8x256xf32, #tpu.memory_space<vmem>>) attributes {dimension_semantics = [#tpu.dimension_semantics<parallel>], iteration_bounds = array<i64: 2>, scalar_prefetch = 0 : i64, scratch_operands = 0 : i64, tpu.core_type = #tpu.core_type<tc>, window_params = [{transform_indices = @transform_0, window_bounds = array<i64: 4, 256>}, {transform_indices = @transform_1, window_bounds = array<i64: 6, 256>}, {pipeline_mode = #tpu.pipeline_mode<synchronous>, transform_indices = @transform_2, window_bounds = array<i64: 8, 4>}, {pipeline_mode = #tpu.pipeline_mode<synchronous>, transform_indices = @transform_3, window_bounds = array<i64: 8, 6>}, {pipeline_mode = #tpu.pipeline_mode<synchronous>, transform_indices = @transform_4, window_bounds = array<i64: 3, 9, 8, 256>}, {pipeline_mode = #tpu.pipeline_mode<synchronous>, transform_indices = @transform_5, window_bounds = array<i64: 3, 8, 8>}, {pipeline_mode = #tpu.pipeline_mode<synchronous>, transform_indices = @transform_6, window_bounds = array<i64: 8, 24>}, {pipeline_mode = #tpu.pipeline_mode<synchronous>, transform_indices = @transform_7, window_bounds = array<i64: 6, 8, 1>}, {transform_indices = @transform_8, window_bounds = array<i64: 24, 256>}, {transform_indices = @transform_9, window_bounds = array<i64: 8, 256>}]} {
    %c0 = arith.constant 0 : index
    %c0_0 = arith.constant 0 : index
    %0 = vector.load %arg2[%c0, %c0_0] : memref<6x256xf32, #tpu.memory_space<vmem>>, vector<6x256xf32>
    %c1 = arith.constant 1 : index
    %c0_1 = arith.constant 0 : index
    %c0_2 = arith.constant 0 : index
    %1 = vector.load %arg8[%c1, %c0_1, %c0_2] : memref<6x8x1xf32, #tpu.memory_space<vmem>>, vector<1x8x1xf32>
    %2 = vector.shape_cast %1 : vector<1x8x1xf32> to vector<8x1xf32>
    %cst = arith.constant 0.000000e+00 : f32
    %3 = vector.broadcast %cst : f32 to vector<6x256xf32>
    %4 = arith.maximumf %0, %3 : vector<6x256xf32>
    %c0_3 = arith.constant 0 : index
    %c0_4 = arith.constant 0 : index
    %5 = vector.load %arg4[%c0_3, %c0_4] : memref<8x6xf32, #tpu.memory_space<vmem>>, vector<8x6xf32>
    %cst_5 = arith.constant dense<0.000000e+00> : vector<8x256xf32>
    %6 = tpu.matmul %5, %4, %cst_5 {dimension_numbers = #tpu.dot_dimension_numbers<[1], [0], [0], [1], [0, 0, 1, 1], [], []>} : vector<8x6xf32>, vector<6x256xf32>, vector<8x256xf32> -> vector<8x256xf32>
    %7 = vector.broadcast %2 : vector<8x1xf32> to vector<8x256xf32>
    %8 = arith.addf %6, %7 : vector<8x256xf32>
    %c0_6 = arith.constant 0 : index
    %c0_7 = arith.constant 0 : index
    %9 = vector.load %arg1[%c0_6, %c0_7] : memref<4x256xf32, #tpu.memory_space<vmem>>, vector<4x256xf32>
    %c0_8 = arith.constant 0 : index
    %c0_9 = arith.constant 0 : index
    %c0_10 = arith.constant 0 : index
    %10 = vector.load %arg8[%c0_8, %c0_9, %c0_10] : memref<6x8x1xf32, #tpu.memory_space<vmem>>, vector<1x8x1xf32>
    %11 = vector.shape_cast %10 : vector<1x8x1xf32> to vector<8x1xf32>
    %cst_11 = arith.constant 0.000000e+00 : f32
    %12 = vector.broadcast %cst_11 : f32 to vector<4x256xf32>
    %13 = arith.maximumf %9, %12 : vector<4x256xf32>
    %c0_12 = arith.constant 0 : index
    %c0_13 = arith.constant 0 : index
    %14 = vector.load %arg3[%c0_12, %c0_13] : memref<8x4xf32, #tpu.memory_space<vmem>>, vector<8x4xf32>
    %cst_14 = arith.constant dense<0.000000e+00> : vector<8x256xf32>
    %15 = tpu.matmul %14, %13, %cst_14 {dimension_numbers = #tpu.dot_dimension_numbers<[1], [0], [0], [1], [0, 0, 1, 1], [], []>} : vector<8x4xf32>, vector<4x256xf32>, vector<8x256xf32> -> vector<8x256xf32>
    %16 = vector.broadcast %11 : vector<8x1xf32> to vector<8x256xf32>
    %17 = arith.addf %15, %16 : vector<8x256xf32>
    %cst_15 = arith.constant 0.000000e+00 : f32
    %18 = vector.broadcast %cst_15 : f32 to vector<8x256xf32>
    %19 = arith.maximumf %17, %18 : vector<8x256xf32>
    %c0_16 = arith.constant 0 : index
    %c0_17 = arith.constant 0 : index
    %c0_18 = arith.constant 0 : index
    %c0_19 = arith.constant 0 : index
    %20 = vector.load %arg5[%c0_16, %c0_17, %c0_18, %c0_19] : memref<3x9x8x256xf32, #tpu.memory_space<vmem>>, vector<1x9x8x256xf32>
    %21 = vector.shape_cast %20 : vector<1x9x8x256xf32> to vector<9x8x256xf32>
    %cst_20 = arith.constant 0.000000e+00 : f32
    %22 = vector.broadcast %cst_20 : f32 to vector<8x256xf32>
    %c17_i32 = arith.constant 17 : i32
    %23 = tpu.dynamic_rotate %19 by %c17_i32 dim 1 : vector<8x256xf32>, i32 -> vector<8x256xf32>
    %24 = vector.extract_strided_slice %21 {offsets = [0, 0, 0], sizes = [1, 8, 256], strides = [1, 1, 1]} : vector<9x8x256xf32> to vector<1x8x256xf32>
    %25 = vector.shape_cast %24 : vector<1x8x256xf32> to vector<8x256xf32>
    %26 = arith.mulf %23, %25 : vector<8x256xf32>
    %27 = arith.addf %22, %26 : vector<8x256xf32>
    %c16_i32 = arith.constant 16 : i32
    %28 = tpu.dynamic_rotate %19 by %c16_i32 dim 1 : vector<8x256xf32>, i32 -> vector<8x256xf32>
    %29 = vector.extract_strided_slice %21 {offsets = [1, 0, 0], sizes = [1, 8, 256], strides = [1, 1, 1]} : vector<9x8x256xf32> to vector<1x8x256xf32>
    %30 = vector.shape_cast %29 : vector<1x8x256xf32> to vector<8x256xf32>
    %31 = arith.mulf %28, %30 : vector<8x256xf32>
    %32 = arith.addf %27, %31 : vector<8x256xf32>
    %c15_i32 = arith.constant 15 : i32
    %33 = tpu.dynamic_rotate %19 by %c15_i32 dim 1 : vector<8x256xf32>, i32 -> vector<8x256xf32>
    %34 = vector.extract_strided_slice %21 {offsets = [2, 0, 0], sizes = [1, 8, 256], strides = [1, 1, 1]} : vector<9x8x256xf32> to vector<1x8x256xf32>
    %35 = vector.shape_cast %34 : vector<1x8x256xf32> to vector<8x256xf32>
    %36 = arith.mulf %33, %35 : vector<8x256xf32>
    %37 = arith.addf %32, %36 : vector<8x256xf32>
    %c1_i32 = arith.constant 1 : i32
    %38 = tpu.dynamic_rotate %19 by %c1_i32 dim 1 : vector<8x256xf32>, i32 -> vector<8x256xf32>
    %39 = vector.extract_strided_slice %21 {offsets = [3, 0, 0], sizes = [1, 8, 256], strides = [1, 1, 1]} : vector<9x8x256xf32> to vector<1x8x256xf32>
    %40 = vector.shape_cast %39 : vector<1x8x256xf32> to vector<8x256xf32>
    %41 = arith.mulf %38, %40 : vector<8x256xf32>
    %42 = arith.addf %37, %41 : vector<8x256xf32>
    %43 = vector.extract_strided_slice %21 {offsets = [4, 0, 0], sizes = [1, 8, 256], strides = [1, 1, 1]} : vector<9x8x256xf32> to vector<1x8x256xf32>
    %44 = vector.shape_cast %43 : vector<1x8x256xf32> to vector<8x256xf32>
    %45 = arith.mulf %19, %44 : vector<8x256xf32>
    %46 = arith.addf %42, %45 : vector<8x256xf32>
    %c255_i32 = arith.constant 255 : i32
    %47 = tpu.dynamic_rotate %19 by %c255_i32 dim 1 : vector<8x256xf32>, i32 -> vector<8x256xf32>
    %48 = vector.extract_strided_slice %21 {offsets = [5, 0, 0], sizes = [1, 8, 256], strides = [1, 1, 1]} : vector<9x8x256xf32> to vector<1x8x256xf32>
    %49 = vector.shape_cast %48 : vector<1x8x256xf32> to vector<8x256xf32>
    %50 = arith.mulf %47, %49 : vector<8x256xf32>
    %51 = arith.addf %46, %50 : vector<8x256xf32>
    %c241_i32 = arith.constant 241 : i32
    %52 = tpu.dynamic_rotate %19 by %c241_i32 dim 1 : vector<8x256xf32>, i32 -> vector<8x256xf32>
    %53 = vector.extract_strided_slice %21 {offsets = [6, 0, 0], sizes = [1, 8, 256], strides = [1, 1, 1]} : vector<9x8x256xf32> to vector<1x8x256xf32>
    %54 = vector.shape_cast %53 : vector<1x8x256xf32> to vector<8x256xf32>
    %55 = arith.mulf %52, %54 : vector<8x256xf32>
    %56 = arith.addf %51, %55 : vector<8x256xf32>
    %c240_i32 = arith.constant 240 : i32
    %57 = tpu.dynamic_rotate %19 by %c240_i32 dim 1 : vector<8x256xf32>, i32 -> vector<8x256xf32>
    %58 = vector.extract_strided_slice %21 {offsets = [7, 0, 0], sizes = [1, 8, 256], strides = [1, 1, 1]} : vector<9x8x256xf32> to vector<1x8x256xf32>
    %59 = vector.shape_cast %58 : vector<1x8x256xf32> to vector<8x256xf32>
    %60 = arith.mulf %57, %59 : vector<8x256xf32>
    %61 = arith.addf %56, %60 : vector<8x256xf32>
    %c239_i32 = arith.constant 239 : i32
    %62 = tpu.dynamic_rotate %19 by %c239_i32 dim 1 : vector<8x256xf32>, i32 -> vector<8x256xf32>
    %63 = vector.extract_strided_slice %21 {offsets = [8, 0, 0], sizes = [1, 8, 256], strides = [1, 1, 1]} : vector<9x8x256xf32> to vector<1x8x256xf32>
    %64 = vector.shape_cast %63 : vector<1x8x256xf32> to vector<8x256xf32>
    %65 = arith.mulf %62, %64 : vector<8x256xf32>
    %66 = arith.addf %61, %65 : vector<8x256xf32>
    %c0_21 = arith.constant 0 : index
    %c0_22 = arith.constant 0 : index
    %c0_23 = arith.constant 0 : index
    %67 = vector.load %arg6[%c0_21, %c0_22, %c0_23] : memref<3x8x8xf32, #tpu.memory_space<vmem>>, vector<1x8x8xf32>
    %68 = vector.shape_cast %67 : vector<1x8x8xf32> to vector<8x8xf32>
    %cst_24 = arith.constant dense<0.000000e+00> : vector<8x256xf32>
    %69 = tpu.matmul %68, %66, %cst_24 {dimension_numbers = #tpu.dot_dimension_numbers<[1], [0], [0], [1], [0, 0, 1, 1], [], []>} : vector<8x8xf32>, vector<8x256xf32>, vector<8x256xf32> -> vector<8x256xf32>
    %c3 = arith.constant 3 : index
    %c0_25 = arith.constant 0 : index
    %c0_26 = arith.constant 0 : index
    %70 = vector.load %arg8[%c3, %c0_25, %c0_26] : memref<6x8x1xf32, #tpu.memory_space<vmem>>, vector<1x8x1xf32>
    %71 = vector.shape_cast %70 : vector<1x8x1xf32> to vector<8x1xf32>
    %72 = vector.broadcast %71 : vector<8x1xf32> to vector<8x256xf32>
    %73 = arith.addf %69, %72 : vector<8x256xf32>
    %74 = arith.addf %73, %8 : vector<8x256xf32>
    %cst_27 = arith.constant 0.000000e+00 : f32
    %75 = vector.broadcast %cst_27 : f32 to vector<8x256xf32>
    %76 = arith.maximumf %17, %75 : vector<8x256xf32>
    %c1_28 = arith.constant 1 : index
    %c0_29 = arith.constant 0 : index
    %c0_30 = arith.constant 0 : index
    %c0_31 = arith.constant 0 : index
    %77 = vector.load %arg5[%c1_28, %c0_29, %c0_30, %c0_31] : memref<3x9x8x256xf32, #tpu.memory_space<vmem>>, vector<1x9x8x256xf32>
    %78 = vector.shape_cast %77 : vector<1x9x8x256xf32> to vector<9x8x256xf32>
    %cst_32 = arith.constant 0.000000e+00 : f32
    %79 = vector.broadcast %cst_32 : f32 to vector<8x256xf32>
    %c17_i32_33 = arith.constant 17 : i32
    %80 = tpu.dynamic_rotate %76 by %c17_i32_33 dim 1 : vector<8x256xf32>, i32 -> vector<8x256xf32>
    %81 = vector.extract_strided_slice %78 {offsets = [0, 0, 0], sizes = [1, 8, 256], strides = [1, 1, 1]} : vector<9x8x256xf32> to vector<1x8x256xf32>
    %82 = vector.shape_cast %81 : vector<1x8x256xf32> to vector<8x256xf32>
    %83 = arith.mulf %80, %82 : vector<8x256xf32>
    %84 = arith.addf %79, %83 : vector<8x256xf32>
    %c16_i32_34 = arith.constant 16 : i32
    %85 = tpu.dynamic_rotate %76 by %c16_i32_34 dim 1 : vector<8x256xf32>, i32 -> vector<8x256xf32>
    %86 = vector.extract_strided_slice %78 {offsets = [1, 0, 0], sizes = [1, 8, 256], strides = [1, 1, 1]} : vector<9x8x256xf32> to vector<1x8x256xf32>
    %87 = vector.shape_cast %86 : vector<1x8x256xf32> to vector<8x256xf32>
    %88 = arith.mulf %85, %87 : vector<8x256xf32>
    %89 = arith.addf %84, %88 : vector<8x256xf32>
    %c15_i32_35 = arith.constant 15 : i32
    %90 = tpu.dynamic_rotate %76 by %c15_i32_35 dim 1 : vector<8x256xf32>, i32 -> vector<8x256xf32>
    %91 = vector.extract_strided_slice %78 {offsets = [2, 0, 0], sizes = [1, 8, 256], strides = [1, 1, 1]} : vector<9x8x256xf32> to vector<1x8x256xf32>
    %92 = vector.shape_cast %91 : vector<1x8x256xf32> to vector<8x256xf32>
    %93 = arith.mulf %90, %92 : vector<8x256xf32>
    %94 = arith.addf %89, %93 : vector<8x256xf32>
    %c1_i32_36 = arith.constant 1 : i32
    %95 = tpu.dynamic_rotate %76 by %c1_i32_36 dim 1 : vector<8x256xf32>, i32 -> vector<8x256xf32>
    %96 = vector.extract_strided_slice %78 {offsets = [3, 0, 0], sizes = [1, 8, 256], strides = [1, 1, 1]} : vector<9x8x256xf32> to vector<1x8x256xf32>
    %97 = vector.shape_cast %96 : vector<1x8x256xf32> to vector<8x256xf32>
    %98 = arith.mulf %95, %97 : vector<8x256xf32>
    %99 = arith.addf %94, %98 : vector<8x256xf32>
    %100 = vector.extract_strided_slice %78 {offsets = [4, 0, 0], sizes = [1, 8, 256], strides = [1, 1, 1]} : vector<9x8x256xf32> to vector<1x8x256xf32>
    %101 = vector.shape_cast %100 : vector<1x8x256xf32> to vector<8x256xf32>
    %102 = arith.mulf %76, %101 : vector<8x256xf32>
    %103 = arith.addf %99, %102 : vector<8x256xf32>
    %c255_i32_37 = arith.constant 255 : i32
    %104 = tpu.dynamic_rotate %76 by %c255_i32_37 dim 1 : vector<8x256xf32>, i32 -> vector<8x256xf32>
    %105 = vector.extract_strided_slice %78 {offsets = [5, 0, 0], sizes = [1, 8, 256], strides = [1, 1, 1]} : vector<9x8x256xf32> to vector<1x8x256xf32>
    %106 = vector.shape_cast %105 : vector<1x8x256xf32> to vector<8x256xf32>
    %107 = arith.mulf %104, %106 : vector<8x256xf32>
    %108 = arith.addf %103, %107 : vector<8x256xf32>
    %c241_i32_38 = arith.constant 241 : i32
    %109 = tpu.dynamic_rotate %76 by %c241_i32_38 dim 1 : vector<8x256xf32>, i32 -> vector<8x256xf32>
    %110 = vector.extract_strided_slice %78 {offsets = [6, 0, 0], sizes = [1, 8, 256], strides = [1, 1, 1]} : vector<9x8x256xf32> to vector<1x8x256xf32>
    %111 = vector.shape_cast %110 : vector<1x8x256xf32> to vector<8x256xf32>
    %112 = arith.mulf %109, %111 : vector<8x256xf32>
    %113 = arith.addf %108, %112 : vector<8x256xf32>
    %c240_i32_39 = arith.constant 240 : i32
    %114 = tpu.dynamic_rotate %76 by %c240_i32_39 dim 1 : vector<8x256xf32>, i32 -> vector<8x256xf32>
    %115 = vector.extract_strided_slice %78 {offsets = [7, 0, 0], sizes = [1, 8, 256], strides = [1, 1, 1]} : vector<9x8x256xf32> to vector<1x8x256xf32>
    %116 = vector.shape_cast %115 : vector<1x8x256xf32> to vector<8x256xf32>
    %117 = arith.mulf %114, %116 : vector<8x256xf32>
    %118 = arith.addf %113, %117 : vector<8x256xf32>
    %c239_i32_40 = arith.constant 239 : i32
    %119 = tpu.dynamic_rotate %76 by %c239_i32_40 dim 1 : vector<8x256xf32>, i32 -> vector<8x256xf32>
    %120 = vector.extract_strided_slice %78 {offsets = [8, 0, 0], sizes = [1, 8, 256], strides = [1, 1, 1]} : vector<9x8x256xf32> to vector<1x8x256xf32>
    %121 = vector.shape_cast %120 : vector<1x8x256xf32> to vector<8x256xf32>
    %122 = arith.mulf %119, %121 : vector<8x256xf32>
    %123 = arith.addf %118, %122 : vector<8x256xf32>
    %c1_41 = arith.constant 1 : index
    %c0_42 = arith.constant 0 : index
    %c0_43 = arith.constant 0 : index
    %124 = vector.load %arg6[%c1_41, %c0_42, %c0_43] : memref<3x8x8xf32, #tpu.memory_space<vmem>>, vector<1x8x8xf32>
    %125 = vector.shape_cast %124 : vector<1x8x8xf32> to vector<8x8xf32>
    %cst_44 = arith.constant dense<0.000000e+00> : vector<8x256xf32>
    %126 = tpu.matmul %125, %123, %cst_44 {dimension_numbers = #tpu.dot_dimension_numbers<[1], [0], [0], [1], [0, 0, 1, 1], [], []>} : vector<8x8xf32>, vector<8x256xf32>, vector<8x256xf32> -> vector<8x256xf32>
    %c4 = arith.constant 4 : index
    %c0_45 = arith.constant 0 : index
    %c0_46 = arith.constant 0 : index
    %127 = vector.load %arg8[%c4, %c0_45, %c0_46] : memref<6x8x1xf32, #tpu.memory_space<vmem>>, vector<1x8x1xf32>
    %128 = vector.shape_cast %127 : vector<1x8x1xf32> to vector<8x1xf32>
    %129 = vector.broadcast %128 : vector<8x1xf32> to vector<8x256xf32>
    %130 = arith.addf %126, %129 : vector<8x256xf32>
    %131 = arith.addf %130, %8 : vector<8x256xf32>
    %cst_47 = arith.constant 0.000000e+00 : f32
    %132 = vector.broadcast %cst_47 : f32 to vector<8x256xf32>
    %133 = arith.maximumf %17, %132 : vector<8x256xf32>
    %c2 = arith.constant 2 : index
    %c0_48 = arith.constant 0 : index
    %c0_49 = arith.constant 0 : index
    %c0_50 = arith.constant 0 : index
    %134 = vector.load %arg5[%c2, %c0_48, %c0_49, %c0_50] : memref<3x9x8x256xf32, #tpu.memory_space<vmem>>, vector<1x9x8x256xf32>
    %135 = vector.shape_cast %134 : vector<1x9x8x256xf32> to vector<9x8x256xf32>
    %cst_51 = arith.constant 0.000000e+00 : f32
    %136 = vector.broadcast %cst_51 : f32 to vector<8x256xf32>
    %c17_i32_52 = arith.constant 17 : i32
    %137 = tpu.dynamic_rotate %133 by %c17_i32_52 dim 1 : vector<8x256xf32>, i32 -> vector<8x256xf32>
    %138 = vector.extract_strided_slice %135 {offsets = [0, 0, 0], sizes = [1, 8, 256], strides = [1, 1, 1]} : vector<9x8x256xf32> to vector<1x8x256xf32>
    %139 = vector.shape_cast %138 : vector<1x8x256xf32> to vector<8x256xf32>
    %140 = arith.mulf %137, %139 : vector<8x256xf32>
    %141 = arith.addf %136, %140 : vector<8x256xf32>
    %c16_i32_53 = arith.constant 16 : i32
    %142 = tpu.dynamic_rotate %133 by %c16_i32_53 dim 1 : vector<8x256xf32>, i32 -> vector<8x256xf32>
    %143 = vector.extract_strided_slice %135 {offsets = [1, 0, 0], sizes = [1, 8, 256], strides = [1, 1, 1]} : vector<9x8x256xf32> to vector<1x8x256xf32>
    %144 = vector.shape_cast %143 : vector<1x8x256xf32> to vector<8x256xf32>
    %145 = arith.mulf %142, %144 : vector<8x256xf32>
    %146 = arith.addf %141, %145 : vector<8x256xf32>
    %c15_i32_54 = arith.constant 15 : i32
    %147 = tpu.dynamic_rotate %133 by %c15_i32_54 dim 1 : vector<8x256xf32>, i32 -> vector<8x256xf32>
    %148 = vector.extract_strided_slice %135 {offsets = [2, 0, 0], sizes = [1, 8, 256], strides = [1, 1, 1]} : vector<9x8x256xf32> to vector<1x8x256xf32>
    %149 = vector.shape_cast %148 : vector<1x8x256xf32> to vector<8x256xf32>
    %150 = arith.mulf %147, %149 : vector<8x256xf32>
    %151 = arith.addf %146, %150 : vector<8x256xf32>
    %c1_i32_55 = arith.constant 1 : i32
    %152 = tpu.dynamic_rotate %133 by %c1_i32_55 dim 1 : vector<8x256xf32>, i32 -> vector<8x256xf32>
    %153 = vector.extract_strided_slice %135 {offsets = [3, 0, 0], sizes = [1, 8, 256], strides = [1, 1, 1]} : vector<9x8x256xf32> to vector<1x8x256xf32>
    %154 = vector.shape_cast %153 : vector<1x8x256xf32> to vector<8x256xf32>
    %155 = arith.mulf %152, %154 : vector<8x256xf32>
    %156 = arith.addf %151, %155 : vector<8x256xf32>
    %157 = vector.extract_strided_slice %135 {offsets = [4, 0, 0], sizes = [1, 8, 256], strides = [1, 1, 1]} : vector<9x8x256xf32> to vector<1x8x256xf32>
    %158 = vector.shape_cast %157 : vector<1x8x256xf32> to vector<8x256xf32>
    %159 = arith.mulf %133, %158 : vector<8x256xf32>
    %160 = arith.addf %156, %159 : vector<8x256xf32>
    %c255_i32_56 = arith.constant 255 : i32
    %161 = tpu.dynamic_rotate %133 by %c255_i32_56 dim 1 : vector<8x256xf32>, i32 -> vector<8x256xf32>
    %162 = vector.extract_strided_slice %135 {offsets = [5, 0, 0], sizes = [1, 8, 256], strides = [1, 1, 1]} : vector<9x8x256xf32> to vector<1x8x256xf32>
    %163 = vector.shape_cast %162 : vector<1x8x256xf32> to vector<8x256xf32>
    %164 = arith.mulf %161, %163 : vector<8x256xf32>
    %165 = arith.addf %160, %164 : vector<8x256xf32>
    %c241_i32_57 = arith.constant 241 : i32
    %166 = tpu.dynamic_rotate %133 by %c241_i32_57 dim 1 : vector<8x256xf32>, i32 -> vector<8x256xf32>
    %167 = vector.extract_strided_slice %135 {offsets = [6, 0, 0], sizes = [1, 8, 256], strides = [1, 1, 1]} : vector<9x8x256xf32> to vector<1x8x256xf32>
    %168 = vector.shape_cast %167 : vector<1x8x256xf32> to vector<8x256xf32>
    %169 = arith.mulf %166, %168 : vector<8x256xf32>
    %170 = arith.addf %165, %169 : vector<8x256xf32>
    %c240_i32_58 = arith.constant 240 : i32
    %171 = tpu.dynamic_rotate %133 by %c240_i32_58 dim 1 : vector<8x256xf32>, i32 -> vector<8x256xf32>
    %172 = vector.extract_strided_slice %135 {offsets = [7, 0, 0], sizes = [1, 8, 256], strides = [1, 1, 1]} : vector<9x8x256xf32> to vector<1x8x256xf32>
    %173 = vector.shape_cast %172 : vector<1x8x256xf32> to vector<8x256xf32>
    %174 = arith.mulf %171, %173 : vector<8x256xf32>
    %175 = arith.addf %170, %174 : vector<8x256xf32>
    %c239_i32_59 = arith.constant 239 : i32
    %176 = tpu.dynamic_rotate %133 by %c239_i32_59 dim 1 : vector<8x256xf32>, i32 -> vector<8x256xf32>
    %177 = vector.extract_strided_slice %135 {offsets = [8, 0, 0], sizes = [1, 8, 256], strides = [1, 1, 1]} : vector<9x8x256xf32> to vector<1x8x256xf32>
    %178 = vector.shape_cast %177 : vector<1x8x256xf32> to vector<8x256xf32>
    %179 = arith.mulf %176, %178 : vector<8x256xf32>
    %180 = arith.addf %175, %179 : vector<8x256xf32>
    %c2_60 = arith.constant 2 : index
    %c0_61 = arith.constant 0 : index
    %c0_62 = arith.constant 0 : index
    %181 = vector.load %arg6[%c2_60, %c0_61, %c0_62] : memref<3x8x8xf32, #tpu.memory_space<vmem>>, vector<1x8x8xf32>
    %182 = vector.shape_cast %181 : vector<1x8x8xf32> to vector<8x8xf32>
    %cst_63 = arith.constant dense<0.000000e+00> : vector<8x256xf32>
    %183 = tpu.matmul %182, %180, %cst_63 {dimension_numbers = #tpu.dot_dimension_numbers<[1], [0], [0], [1], [0, 0, 1, 1], [], []>} : vector<8x8xf32>, vector<8x256xf32>, vector<8x256xf32> -> vector<8x256xf32>
    %c5 = arith.constant 5 : index
    %c0_64 = arith.constant 0 : index
    %c0_65 = arith.constant 0 : index
    %184 = vector.load %arg8[%c5, %c0_64, %c0_65] : memref<6x8x1xf32, #tpu.memory_space<vmem>>, vector<1x8x1xf32>
    %185 = vector.shape_cast %184 : vector<1x8x1xf32> to vector<8x1xf32>
    %186 = vector.broadcast %185 : vector<8x1xf32> to vector<8x256xf32>
    %187 = arith.addf %183, %186 : vector<8x256xf32>
    %188 = arith.addf %187, %8 : vector<8x256xf32>
    %189 = tpu.concatenate %74, %131, %188 in 0 : vector<8x256xf32>, vector<8x256xf32>, vector<8x256xf32> -> vector<24x256xf32>
    %c0_66 = arith.constant 0 : index
    %c0_67 = arith.constant 0 : index
    %190 = vector.load %arg9[%c0_66, %c0_67] : memref<24x256xf32, #tpu.memory_space<vmem>>, vector<24x256xf32>
    tpu.vector_store %arg9[%c0_66, %c0_67], %189 {strides = array<i32>} : memref<24x256xf32, #tpu.memory_space<vmem>>, vector<24x256xf32>,
    %c0_68 = arith.constant 0 : index
    %c0_69 = arith.constant 0 : index
    %191 = vector.load %arg7[%c0_68, %c0_69] : memref<8x24xf32, #tpu.memory_space<vmem>>, vector<8x24xf32>
    %cst_70 = arith.constant 0.000000e+00 : f32
    %192 = vector.broadcast %cst_70 : f32 to vector<24x256xf32>
    %193 = arith.maximumf %189, %192 : vector<24x256xf32>
    %cst_71 = arith.constant dense<0.000000e+00> : vector<8x256xf32>
    %194 = tpu.matmul %191, %193, %cst_71 {dimension_numbers = #tpu.dot_dimension_numbers<[1], [0], [0], [1], [0, 0, 1, 1], [], []>} : vector<8x24xf32>, vector<24x256xf32>, vector<8x256xf32> -> vector<8x256xf32>
    %c2_72 = arith.constant 2 : index
    %c0_73 = arith.constant 0 : index
    %c0_74 = arith.constant 0 : index
    %195 = vector.load %arg8[%c2_72, %c0_73, %c0_74] : memref<6x8x1xf32, #tpu.memory_space<vmem>>, vector<1x8x1xf32>
    %196 = vector.shape_cast %195 : vector<1x8x1xf32> to vector<8x1xf32>
    %197 = vector.broadcast %196 : vector<8x1xf32> to vector<8x256xf32>
    %198 = arith.addf %194, %197 : vector<8x256xf32>
    %c0_75 = arith.constant 0 : index
    %c0_76 = arith.constant 0 : index
    %199 = vector.load %arg10[%c0_75, %c0_76] : memref<8x256xf32, #tpu.memory_space<vmem>>, vector<8x256xf32>
    tpu.vector_store %arg10[%c0_75, %c0_76], %198 {strides = array<i32>} : memref<8x256xf32, #tpu.memory_space<vmem>>, vector<8x256xf32>,
    return
  }
  func.func @transform_0(%arg0: i32) -> (i32, i32) {
    %c0_i32 = arith.constant 0 : i32
    %c0_i32_0 = arith.constant 0 : i32
    return %c0_i32, %arg0 : i32, i32
  }
  func.func @transform_1(%arg0: i32) -> (i32, i32) {
    %c0_i32 = arith.constant 0 : i32
    %c0_i32_0 = arith.constant 0 : i32
    return %c0_i32, %arg0 : i32, i32
  }
  func.func @transform_2(%arg0: i32) -> (i32, i32) {
    %c0_i32 = arith.constant 0 : i32
    %c0_i32_0 = arith.constant 0 : i32
    %c0_i32_1 = arith.constant 0 : i32
    return %c0_i32, %c0_i32_0 : i32, i32
  }
  func.func @transform_3(%arg0: i32) -> (i32, i32) {
    %c0_i32 = arith.constant 0 : i32
    %c0_i32_0 = arith.constant 0 : i32
    %c0_i32_1 = arith.constant 0 : i32
    return %c0_i32, %c0_i32_0 : i32, i32
  }
  func.func @transform_4(%arg0: i32) -> (i32, i32, i32, i32) {
    %c0_i32 = arith.constant 0 : i32
    %c0_i32_0 = arith.constant 0 : i32
    %c0_i32_1 = arith.constant 0 : i32
    %c0_i32_2 = arith.constant 0 : i32
    %c0_i32_3 = arith.constant 0 : i32
    return %c0_i32, %c0_i32_0, %c0_i32_1, %c0_i32_2 : i32, i32, i32, i32
  }
  func.func @transform_5(%arg0: i32) -> (i32, i32, i32) {
    %c0_i32 = arith.constant 0 : i32
    %c0_i32_0 = arith.constant 0 : i32
    %c0_i32_1 = arith.constant 0 : i32
    %c0_i32_2 = arith.constant 0 : i32
    return %c0_i32, %c0_i32_0, %c0_i32_1 : i32, i32, i32
  }
  func.func @transform_6(%arg0: i32) -> (i32, i32) {
    %c0_i32 = arith.constant 0 : i32
    %c0_i32_0 = arith.constant 0 : i32
    %c0_i32_1 = arith.constant 0 : i32
    return %c0_i32, %c0_i32_0 : i32, i32
  }
  func.func @transform_7(%arg0: i32) -> (i32, i32, i32) {
    %c0_i32 = arith.constant 0 : i32
    %c0_i32_0 = arith.constant 0 : i32
    %c0_i32_1 = arith.constant 0 : i32
    %c0_i32_2 = arith.constant 0 : i32
    return %c0_i32, %c0_i32_0, %c0_i32_1 : i32, i32, i32
  }
  func.func @transform_8(%arg0: i32) -> (i32, i32) {
    %c0_i32 = arith.constant 0 : i32
    %c0_i32_0 = arith.constant 0 : i32
    return %c0_i32, %arg0 : i32, i32
  }
  func.func @transform_9(%arg0: i32) -> (i32, i32) {
    %c0_i32 = arith.constant 0 : i32
    %c0_i32_0 = arith.constant 0 : i32
    return %c0_i32, %arg0 : i32, i32
  }
}

</mosaic_0001>

<llo_original>
// kernel: tpu_custom_call.1
$region0: #{tpu_custom_call.1}
  #allocation0 [shape = 'u32[]', space=smem, size = 0x4, offset = 0x4, fixed_abs, tag = 'smem constant byte address 0x4 - core index']
  #allocation1 [shape = 'u32[144,128]{1,0:T(1,128)}', space=vmem, size = 0x12000, scoped, tag = 'internal scratch']
  %s0 = inlined_call_operand.hbm [shape: f32[4,512], index: 0, kind: input, shape index: {}]
  %s1 = inlined_call_operand.vmem [shape: f32[6,512], index: 1, kind: input, shape index: {}]
  %s2 = inlined_call_operand.vmem [shape: f32[8,4], index: 2, kind: input, shape index: {}]
  %s3 = inlined_call_operand.vmem [shape: f32[8,6], index: 3, kind: input, shape index: {}]
  %s4 = inlined_call_operand.hbm [shape: f32[3,9,8,256], index: 4, kind: input, shape index: {}]
  %s5 = inlined_call_operand.vmem [shape: f32[3,8,8], index: 5, kind: input, shape index: {}]
  %s6 = inlined_call_operand.vmem [shape: f32[8,24], index: 6, kind: input, shape index: {}]
  %s7 = inlined_call_operand.vmem [shape: f32[6,8,1], index: 7, kind: input, shape index: {}]
  %s8 = inlined_call_operand.hbm [shape: f32[24,512], index: 8, kind: output, shape index: {0}]
  %s9 = inlined_call_operand.hbm [shape: f32[8,512], index: 9, kind: output, shape index: {1}]
  %10 = xla_tuple %s8, %s9
  %s11 = sld [smem:[#allocation0]]
  $region81: #{tpu_custom_call.1} parent=0
    _
  %s13 = ssub.s32 1, %s11
  %s14 = scalar_select 0, %s13, %s11
  $region1: #{tpu_custom_call.1} parent=0
    #allocation2 [shape = 'u8[8192]{0}', space=vmem, size = 0x2000, scoped, tag = 'input window, operand 0']
    #allocation3 [shape = 's32[2]{0}', space=sflag, size = 0x8, scoped, tag = 'scoped memory for tpu_custom_call.1']
    #allocation4 [shape = 's32[2]{0}', space=sflag, size = 0x8, scoped, tag = 'scoped memory for tpu_custom_call.1']
    #allocation5 [shape = 'u8[221184]{0}', space=vmem, size = 0x36000, scoped, tag = 'input window, operand 4, single buffered']
    #allocation6 [shape = 's32[1]{0}', space=sflag, size = 0x4, scoped, tag = 'scoped memory for tpu_custom_call.1']
    #allocation7 [shape = 'u8[49152]{0}', space=vmem, size = 0xc000, scoped, tag = 'output window, operand 0']
    #allocation8 [shape = 'u8[16384]{0}', space=vmem, size = 0x4000, scoped, tag = 'output window, operand 1']
    #allocation9 [shape = 's32[2]{0}', space=sflag, size = 0x8, scoped, tag = 'scoped memory for tpu_custom_call.1']
    %15 = vsyncpa [#allocation3], 0
    %s16 = scalar_lea.sflag [#allocation3], 1
    %17 = vsyncpa %s16, 0
    %18 = vsyncpa [#allocation6], 0
    %19 = vsyncpa [#allocation4], 0
    %s20 = scalar_lea.sflag [#allocation4], 1
    %21 = vsyncpa %s20, 0
    %22 = vsyncpa [#allocation9], 0
    %s23 = scalar_lea.sflag [#allocation9], 1
    %24 = vsyncpa %s23, 0
    loop: start=0, step=1, limit=4
    $region2: #{tpu_custom_call.1} parent=1 // loop_pre_header
      _
    $region3: #{tpu_custom_call.1} parent=1 // loop_header
      %s26 = sphi 0, %s30
      %p27 = scmp.ge.s32.totalorder %s26, 4
      %s36 = sphi 0, %s38
      %s39 = sphi 0, %s36
      %s40 = sphi 0, %s39
      %s56 = sphi 0, %s40
      %s62 = sphi 0, %s64
      %s65 = sphi 0, %s62
      %s66 = sphi 0, %s65
      %s82 = sphi 0, %s66
      %s86 = sphi 0, %s86
      %s88 = sphi 0, %s86
      %s89 = sphi 0, %s88
      %s103 = sphi 0, %s89
      %s107 = sphi 0, %s107
      %s109 = sphi 0, %s107
      %s110 = sphi 0, %s109
      %s124 = sphi 0, %s110
      %s128 = sphi 0, %s128
      %s130 = sphi 0, %s128
      %s131 = sphi 0, %s130
      %s145 = sphi 0, %s131
      %s149 = sphi 0, %s149
      %s151 = sphi 0, %s149
      %s152 = sphi 0, %s151
      %s166 = sphi 0, %s152
      %s170 = sphi 0, %s170
      %s172 = sphi 0, %s170
      %s173 = sphi 0, %s172
      %s187 = sphi 0, %s173
      %s191 = sphi 0, %s191
      %s193 = sphi 0, %s191
      %s194 = sphi 0, %s193
      %s208 = sphi 0, %s194
      %s214 = sphi 0, %s216
      %s217 = sphi 0, %s214
      %s218 = sphi 0, %s217
      %s234 = sphi 0, %s218
      %s240 = sphi 0, %s242
      %s243 = sphi 0, %s240
      %s244 = sphi 0, %s243
      %s260 = sphi 0, %s244
    $region4: #{tpu_custom_call.1} parent=1 // loop_header_branch
      %29 = sbr.rel (%p27) target = $region8
    $region5: #{tpu_custom_call.1} parent=1 // loop_body
      %s31 = ssub.s32 %s26, 1
      %s32 = ssub.s32 %s26, 2
      %s33 = sadd.s32 %s26, 1
      %s34 = ssub.s32 %s26, %s33
      %p35 = scmp.eq.s32.totalorder %s34, 0
      %s37 = sadd.s32 %s36, 1
      %s38 = scalar_select %p35, %s36, %s37
      %p41 = pneg %p35
      %p42 = scmp.eq.s32.totalorder %s26, 1
      %p43 = por %p41, %p42
      %p44 = scmp.ne.s32.totalorder %s36, %s39
      %p45 = scmp.eq.s32.totalorder %s26, 0
      %p46 = por %p44, %p45
      %p47 = scmp.ne.s32.totalorder %s36, %s39
      %p48 = scmp.eq.s32.totalorder %s31, 1
      %p49 = por %p47, %p48
      %p50 = scmp.ne.s32.totalorder %s39, %s40
      %p51 = scmp.eq.s32.totalorder %s31, 0
      %p52 = por %p50, %p51
      %p53 = scmp.ne.s32.totalorder %s39, %s40
      %p54 = scmp.eq.s32.totalorder %s32, 1
      %p55 = por %p53, %p54
      %p57 = scmp.ne.s32.totalorder %s40, %s56
      %p58 = scmp.eq.s32.totalorder %s32, 0
      %p59 = por %p57, %p58
      %s60 = ssub.s32 %s26, %s33
      %p61 = scmp.eq.s32.totalorder %s60, 0
      %s63 = sadd.s32 %s62, 1
      %s64 = scalar_select %p61, %s62, %s63
      %p67 = pneg %p61
      %p68 = scmp.eq.s32.totalorder %s26, 1
      %p69 = por %p67, %p68
      %p70 = scmp.ne.s32.totalorder %s62, %s65
      %p71 = scmp.eq.s32.totalorder %s26, 0
      %p72 = por %p70, %p71
      %p73 = scmp.ne.s32.totalorder %s62, %s65
      %p74 = scmp.eq.s32.totalorder %s31, 1
      %p75 = por %p73, %p74
      %p76 = scmp.ne.s32.totalorder %s65, %s66
      %p77 = scmp.eq.s32.totalorder %s31, 0
      %p78 = por %p76, %p77
      %p79 = scmp.ne.s32.totalorder %s65, %s66
      %p80 = scmp.eq.s32.totalorder %s32, 1
      %p81 = por %p79, %p80
      %p83 = scmp.ne.s32.totalorder %s66, %s82
      %p84 = scmp.eq.s32.totalorder %s32, 0
      %p85 = por %p83, %p84
      %s87 = sadd.s32 %s86, 1
      %p90 = scmp.eq.s32.totalorder %s26, 1
      %p91 = scmp.ne.s32.totalorder %s86, %s88
      %p92 = scmp.eq.s32.totalorder %s26, 0
      %p93 = por %p91, %p92
      %p94 = scmp.ne.s32.totalorder %s86, %s88
      %p95 = scmp.eq.s32.totalorder %s31, 1
      %p96 = por %p94, %p95
      %p97 = scmp.ne.s32.totalorder %s88, %s89
      %p98 = scmp.eq.s32.totalorder %s31, 0
      %p99 = por %p97, %p98
      %p100 = scmp.ne.s32.totalorder %s88, %s89
      %p101 = scmp.eq.s32.totalorder %s32, 1
      %p102 = por %p100, %p101
      %p104 = scmp.ne.s32.totalorder %s89, %s103
      %p105 = scmp.eq.s32.totalorder %s32, 0
      %p106 = por %p104, %p105
      %s108 = sadd.s32 %s107, 1
      %p111 = scmp.eq.s32.totalorder %s26, 1
      %p112 = scmp.ne.s32.totalorder %s107, %s109
      %p113 = scmp.eq.s32.totalorder %s26, 0
      %p114 = por %p112, %p113
      %p115 = scmp.ne.s32.totalorder %s107, %s109
      %p116 = scmp.eq.s32.totalorder %s31, 1
      %p117 = por %p115, %p116
      %p118 = scmp.ne.s32.totalorder %s109, %s110
      %p119 = scmp.eq.s32.totalorder %s31, 0
      %p120 = por %p118, %p119
      %p121 = scmp.ne.s32.totalorder %s109, %s110
      %p122 = scmp.eq.s32.totalorder %s32, 1
      %p123 = por %p121, %p122
      %p125 = scmp.ne.s32.totalorder %s110, %s124
      %p126 = scmp.eq.s32.totalorder %s32, 0
      %p127 = por %p125, %p126
      %s129 = sadd.s32 %s128, 1
      %p132 = scmp.eq.s32.totalorder %s26, 1
      %p133 = scmp.ne.s32.totalorder %s128, %s130
      %p134 = scmp.eq.s32.totalorder %s26, 0
      %p135 = por %p133, %p134
      %p136 = scmp.ne.s32.totalorder %s128, %s130
      %p137 = scmp.eq.s32.totalorder %s31, 1
      %p138 = por %p136, %p137
      %p139 = scmp.ne.s32.totalorder %s130, %s131
      %p140 = scmp.eq.s32.totalorder %s31, 0
      %p141 = por %p139, %p140
      %p142 = scmp.ne.s32.totalorder %s130, %s131
      %p143 = scmp.eq.s32.totalorder %s32, 1
      %p144 = por %p142, %p143
      %p146 = scmp.ne.s32.totalorder %s131, %s145
      %p147 = scmp.eq.s32.totalorder %s32, 0
      %p148 = por %p146, %p147
      %s150 = sadd.s32 %s149, 1
      %p153 = scmp.eq.s32.totalorder %s26, 1
      %p154 = scmp.ne.s32.totalorder %s149, %s151
      %p155 = scmp.eq.s32.totalorder %s26, 0
      %p156 = por %p154, %p155
      %p157 = scmp.ne.s32.totalorder %s149, %s151
      %p158 = scmp.eq.s32.totalorder %s31, 1
      %p159 = por %p157, %p158
      %p160 = scmp.ne.s32.totalorder %s151, %s152
      %p161 = scmp.eq.s32.totalorder %s31, 0
      %p162 = por %p160, %p161
      %p163 = scmp.ne.s32.totalorder %s151, %s152
      %p164 = scmp.eq.s32.totalorder %s32, 1
      %p165 = por %p163, %p164
      %p167 = scmp.ne.s32.totalorder %s152, %s166
      %p168 = scmp.eq.s32.totalorder %s32, 0
      %p169 = por %p167, %p168
      %s171 = sadd.s32 %s170, 1
      %p174 = scmp.eq.s32.totalorder %s26, 1
      %p175 = scmp.ne.s32.totalorder %s170, %s172
      %p176 = scmp.eq.s32.totalorder %s26, 0
      %p177 = por %p175, %p176
      %p178 = scmp.ne.s32.totalorder %s170, %s172
      %p179 = scmp.eq.s32.totalorder %s31, 1
      %p180 = por %p178, %p179
      %p181 = scmp.ne.s32.totalorder %s172, %s173
      %p182 = scmp.eq.s32.totalorder %s31, 0
      %p183 = por %p181, %p182
      %p184 = scmp.ne.s32.totalorder %s172, %s173
      %p185 = scmp.eq.s32.totalorder %s32, 1
      %p186 = por %p184, %p185
      %p188 = scmp.ne.s32.totalorder %s173, %s187
      %p189 = scmp.eq.s32.totalorder %s32, 0
      %p190 = por %p188, %p189
      %s192 = sadd.s32 %s191, 1
      %p195 = scmp.eq.s32.totalorder %s26, 1
      %p196 = scmp.ne.s32.totalorder %s191, %s193
      %p197 = scmp.eq.s32.totalorder %s26, 0
      %p198 = por %p196, %p197
      %p199 = scmp.ne.s32.totalorder %s191, %s193
      %p200 = scmp.eq.s32.totalorder %s31, 1
      %p201 = por %p199, %p200
      %p202 = scmp.ne.s32.totalorder %s193, %s194
      %p203 = scmp.eq.s32.totalorder %s31, 0
      %p204 = por %p202, %p203
      %p205 = scmp.ne.s32.totalorder %s193, %s194
      %p206 = scmp.eq.s32.totalorder %s32, 1
      %p207 = por %p205, %p206
      %p209 = scmp.ne.s32.totalorder %s194, %s208
      %p210 = scmp.eq.s32.totalorder %s32, 0
      %p211 = por %p209, %p210
      %s212 = ssub.s32 %s26, %s33
      %p213 = scmp.eq.s32.totalorder %s212, 0
      %s215 = sadd.s32 %s214, 1
      %s216 = scalar_select %p213, %s214, %s215
      %p219 = pneg %p213
      %p220 = scmp.eq.s32.totalorder %s26, 1
      %p221 = por %p219, %p220
      %p222 = scmp.ne.s32.totalorder %s214, %s217
      %p223 = scmp.eq.s32.totalorder %s26, 0
      %p224 = por %p222, %p223
      %p225 = scmp.ne.s32.totalorder %s214, %s217
      %p226 = scmp.eq.s32.totalorder %s31, 1
      %p227 = por %p225, %p226
      %p228 = scmp.ne.s32.totalorder %s217, %s218
      %p229 = scmp.eq.s32.totalorder %s31, 0
      %p230 = por %p228, %p229
      %p231 = scmp.ne.s32.totalorder %s217, %s218
      %p232 = scmp.eq.s32.totalorder %s32, 1
      %p233 = por %p231, %p232
      %p235 = scmp.ne.s32.totalorder %s218, %s234
      %p236 = scmp.eq.s32.totalorder %s32, 0
      %p237 = por %p235, %p236
      %s238 = ssub.s32 %s26, %s33
      %p239 = scmp.eq.s32.totalorder %s238, 0
      %s241 = sadd.s32 %s240, 1
      %s242 = scalar_select %p239, %s240, %s241
      %p245 = pneg %p239
      %p246 = scmp.eq.s32.totalorder %s26, 1
      %p247 = por %p245, %p246
      %p248 = scmp.ne.s32.totalorder %s240, %s243
      %p249 = scmp.eq.s32.totalorder %s26, 0
      %p250 = por %p248, %p249
      %p251 = scmp.ne.s32.totalorder %s240, %s243
      %p252 = scmp.eq.s32.totalorder %s31, 1
      %p253 = por %p251, %p252
      %p254 = scmp.ne.s32.totalorder %s243, %s244
      %p255 = scmp.eq.s32.totalorder %s31, 0
      %p256 = por %p254, %p255
      %p257 = scmp.ne.s32.totalorder %s243, %s244
      %p258 = scmp.eq.s32.totalorder %s32, 1
      %p259 = por %p257, %p258
      %p261 = scmp.ne.s32.totalorder %s244, %s260
      %p262 = scmp.eq.s32.totalorder %s32, 0
      %p263 = por %p261, %p262
      %p264 = scmp.le.s32.totalorder 1, %s26
      %p265 = scmp.lt.s32.totalorder %s26, 3
      %p266 = pnand %p264, %p265
      %p267 = pneg %p266
      // Predicated region
      $region9: #{tpu_custom_call.1} parent=5 // pred_check
        _
      $region10: #{tpu_custom_call.1} parent=5 // pred_check_branch
        %269 = sbr.rel (%p266) target = $region12
      $region11: #{tpu_custom_call.1} parent=5 // pred_region
        %s270 = ssub.s32 %s26, 1
        // Predicated region
        $region13: #{tpu_custom_call.1} parent=11 // pred_check
          %p271 = pneg %p99
        $region14: #{tpu_custom_call.1} parent=11 // pred_check_branch
          %273 = sbr.rel (%p271) target = $region16
        $region15: #{tpu_custom_call.1} parent=11 // pred_region
          _
        $region16: #{tpu_custom_call.1} parent=11 // pred_fallthru
          _
        // Predicated region
        $region17: #{tpu_custom_call.1} parent=11 // pred_check
          %p274 = pneg %p120
        $region18: #{tpu_custom_call.1} parent=11 // pred_check_branch
          %276 = sbr.rel (%p274) target = $region20
        $region19: #{tpu_custom_call.1} parent=11 // pred_region
          _
        $region20: #{tpu_custom_call.1} parent=11 // pred_fallthru
          _
        // Predicated region
        $region21: #{tpu_custom_call.1} parent=11 // pred_check
          %p277 = pneg %p141
        $region22: #{tpu_custom_call.1} parent=11 // pred_check_branch
          %279 = sbr.rel (%p277) target = $region24
        $region23: #{tpu_custom_call.1} parent=11 // pred_region
          %s281 = ssub.s32 6912, 6912
          %282 = vsyncadd [#allocation6], %s281
          %s283 = sshll.u32 [#allocation5], 4
          %s284 = int_to_ptr.vmem [resolvable:$true] %s283
          %289 = dma.hbm_to_vmem [thread:$0]  %s4, 6912, %s284, [#allocation6], 256, 256, 16
        $region24: #{tpu_custom_call.1} parent=11 // pred_fallthru
          _
        // Predicated region
        $region25: #{tpu_custom_call.1} parent=11 // pred_check
          %p290 = pneg %p162
        $region26: #{tpu_custom_call.1} parent=11 // pred_check_branch
          %292 = sbr.rel (%p290) target = $region28
        $region27: #{tpu_custom_call.1} parent=11 // pred_region
          _
        $region28: #{tpu_custom_call.1} parent=11 // pred_fallthru
          _
        // Predicated region
        $region29: #{tpu_custom_call.1} parent=11 // pred_check
          %p293 = pneg %p183
        $region30: #{tpu_custom_call.1} parent=11 // pred_check_branch
          %295 = sbr.rel (%p293) target = $region32
        $region31: #{tpu_custom_call.1} parent=11 // pred_region
          _
        $region32: #{tpu_custom_call.1} parent=11 // pred_fallthru
          _
        // Predicated region
        $region33: #{tpu_custom_call.1} parent=11 // pred_check
          %p296 = pneg %p204
        $region34: #{tpu_custom_call.1} parent=11 // pred_check_branch
          %298 = sbr.rel (%p296) target = $region36
        $region35: #{tpu_custom_call.1} parent=11 // pred_region
          _
        $region36: #{tpu_custom_call.1} parent=11 // pred_fallthru
          _
      $region12: #{tpu_custom_call.1} parent=5 // pred_fallthru
        _
      %p299 = scmp.lt.s32.totalorder %s26, 2
      // Predicated region
      $region37: #{tpu_custom_call.1} parent=5 // pred_check
        %p300 = pneg %p299
      $region38: #{tpu_custom_call.1} parent=5 // pred_check_branch
        %302 = sbr.rel (%p300) target = $region40
      $region39: #{tpu_custom_call.1} parent=5 // pred_region
        // Predicated region
        $region41: #{tpu_custom_call.1} parent=39 // pred_check
          %p303 = pneg %p46
        $region42: #{tpu_custom_call.1} parent=39 // pred_check_branch
          %305 = sbr.rel (%p303) target = $region44
        $region43: #{tpu_custom_call.1} parent=39 // pred_region
          %s306 = sand.u32 %s36, 1
          %s307 = scalar_lea.sflag [#allocation3], %s306
          %s308 = sand.u32 %s36, 1
          %s309 = smul.addr %s308, 8
          %s310 = scalar_lea.vmem [#allocation2], %s309
          %s311 = smul.u32 2, %s26
          %s313 = ssub.s32 128, 128
          %314 = vsyncadd %s307, %s313
          %s315 = smul.addr %s311, 64
          %s316 = scalar_lea.hbm %s0, %s315
          %s318 = sshll.u32 %s310, 4
          %s319 = int_to_ptr.vmem [resolvable:$true] %s318
          %321 = dma.hbm_to_vmem [thread:$0]  %s316, 128, %s319, %s307
        $region44: #{tpu_custom_call.1} parent=39 // pred_fallthru
          _
        // Predicated region
        $region45: #{tpu_custom_call.1} parent=39 // pred_check
          %p322 = pneg %p72
        $region46: #{tpu_custom_call.1} parent=39 // pred_check_branch
          %324 = sbr.rel (%p322) target = $region48
        $region47: #{tpu_custom_call.1} parent=39 // pred_region
          %s325 = smul.u32 2, %s26
          %p326 = scmp.lt.s32.totalorder %s325, 3
          %s327 = scalar_select %p326, %s325, 3
          %s328 = smul.addr %s327, 8
          %s329 = scalar_lea.vmem %s1, %s328
          %s330 = smul.u32 2, %s26
        $region48: #{tpu_custom_call.1} parent=39 // pred_fallthru
          _
      $region40: #{tpu_custom_call.1} parent=5 // pred_fallthru
        _
      %p331 = scmp.le.s32.totalorder 1, %s26
      %p332 = scmp.lt.s32.totalorder %s26, 3
      %p333 = pnand %p331, %p332
      %p334 = pneg %p333
      // Predicated region
      $region49: #{tpu_custom_call.1} parent=5 // pred_check
        _
      $region50: #{tpu_custom_call.1} parent=5 // pred_check_branch
        %336 = sbr.rel (%p333) target = $region52
      $region51: #{tpu_custom_call.1} parent=5 // pred_region
        %s337 = ssub.s32 %s26, 1
        %s338 = sand.u32 %s39, 1
        %s339 = scalar_lea.sflag [#allocation3], %s338
        %s340 = sand.u32 %s39, 1
        %s341 = smul.addr %s340, 8
        %s342 = scalar_lea.vmem [#allocation2], %s341
        // Predicated region
        $region53: #{tpu_custom_call.1} parent=51 // pred_check
          %p343 = pneg %p52
        $region54: #{tpu_custom_call.1} parent=51 // pred_check_branch
          %345 = sbr.rel (%p343) target = $region56
        $region55: #{tpu_custom_call.1} parent=51 // pred_region
          %346 = dma.done %s339, 128
        $region56: #{tpu_custom_call.1} parent=51 // pred_fallthru
          _
        // Predicated region
        $region57: #{tpu_custom_call.1} parent=51 // pred_check
          %p347 = pneg %p141
        $region58: #{tpu_custom_call.1} parent=51 // pred_check_branch
          %349 = sbr.rel (%p347) target = $region60
        $region59: #{tpu_custom_call.1} parent=51 // pred_region
          %350 = dma.done [#allocation6], 6912
        $region60: #{tpu_custom_call.1} parent=51 // pred_fallthru
          _
        %s351 = sand.u32 %s39, 1
        %s352 = scalar_lea.sflag [#allocation3], %s351
        %s353 = sand.u32 %s39, 1
        %s354 = smul.addr %s353, 8
        %s355 = scalar_lea.vmem [#allocation2], %s354
        %p356 = pneg %p52
        %p357 = pneg %p49
        %s358 = smul.u32 2, %s31
        %p359 = scmp.lt.s32.totalorder %s358, 3
        %s360 = scalar_select %p359, %s358, 3
        %s361 = smul.addr %s360, 8
        %s362 = scalar_lea.vmem %s1, %s361
        %p363 = pneg %p78
        %p364 = pneg %p75
        %p365 = pneg %p99
        %p366 = pneg %p96
        %p367 = pneg %p120
        %p368 = pneg %p117
        %p369 = pneg %p141
        %p370 = pneg %p138
        %p371 = pneg %p162
        %p372 = pneg %p159
        %p373 = pneg %p183
        %p374 = pneg %p180
        %p375 = pneg %p204
        %p376 = pneg %p201
        %p377 = pneg %p230
        %p378 = pneg %p227
        %s379 = sand.u32 %s217, 1
        %s380 = scalar_lea.sflag [#allocation4], %s379
        %s381 = sand.u32 %s217, 1
        %s382 = smul.addr %s381, 48
        %s383 = scalar_lea.vmem [#allocation7], %s382
        %p384 = pneg %p256
        %p385 = pneg %p253
        %s386 = sand.u32 %s243, 1
        %s387 = scalar_lea.sflag [#allocation9], %s386
        %s388 = sand.u32 %s243, 1
        %s389 = smul.addr %s388, 16
        %s390 = scalar_lea.vmem [#allocation8], %s389
        %s391 = smul.u32 2, %s31
        %s392 = smul.u32 2, %s31
        %p393 = scmp.lt.s32.totalorder %s392, 3
        %s394 = scalar_select %p393, %s392, 3
        %s395 = smul.addr %s394, 8
        %s396 = scalar_lea.vmem %s1, %s395
        %s397 = smul.u32 2, %s31
        %s398 = smul.u32 2, %s31
        %s399 = smul.u32 2, %s31
        %v400 = vld [vmem:[%s396] sm:$0x3f]
        %v401 = vld [vmem:[%s396 + $0x8] sm:$0x3f]
        %s402 = scalar_lea.vmem %s7, 8
        %v403 = vld [vmem:[%s402] sm:$0xff]
        %v404 = vmax.f32 %v400, 0.0
        %v405 = vmax.f32 %v401, 0.0
        %v406 = vld [vmem:[%s3] sm:$0xff]
        %408 = vset.pattern.permute.xlu0 0
        %409 = vperm.xlu0 %408, %v403
        %v410 = vpop.permute.xlu0 %409
        %vm412 = vcmask 48128
        %v414 = vsel %vm412, %v406, 0
        %vm416 = vcmask 1045504
        %v418 = vsel %vm416, %v404, 0
        %v421 = vsel %vm416, %v405, 0
        %423 = vmatprep.subr.mxu0 0.0
        %424 = vmatpush1.msra.mxu0 0.0
        %425 = vmatprep.subr.mxu0 0.0
        %426 = vmatpush1.msra.mxu0 0.0
        %427 = vmatprep.subr.mxu0 0.0
        %428 = vmatpush1.msra.mxu0 0.0
        %429 = vmatprep.subr.mxu0 0.0
        %430 = vmatpush1.msra.mxu0 0.0
        %431 = vmatprep.subr.mxu0 0.0
        %432 = vmatpush1.msra.mxu0 0.0
        %433 = vmatprep.subr.mxu0 0.0
        %434 = vmatpush1.msra.mxu0 0.0
        %435 = vmatprep.subr.mxu0 0.0
        %436 = vmatpush1.msra.mxu0 0.0
        %437 = vmatprep.subr.mxu0 0.0
        %438 = vmatpush1.msra.mxu0 0.0
        %439 = vmatprep.subr.mxu0 0.0
        %440 = vmatpush1.msra.mxu0 0.0
        %441 = vmatprep.subr.mxu0 0.0
        %442 = vmatpush1.msra.mxu0 0.0
        %443 = vmatprep.subr.mxu0 0.0
        %444 = vmatpush1.msra.mxu0 0.0
        %445 = vmatprep.subr.mxu0 0.0
        %446 = vmatpush1.msra.mxu0 0.0
        %447 = vmatprep.subr.mxu0 0.0
        %448 = vmatpush1.msra.mxu0 0.0
        %449 = vmatprep.subr.mxu0 0.0
        %450 = vmatpush1.msra.mxu0 0.0
        %451 = vmatprep.subr.mxu0 0.0
        %452 = vmatpush1.msra.mxu0 0.0
        %453 = vmatprep.subr.mxu0 %v421
        %454 = vmatpush1.msra.mxu0 %v418
        %455 = vmatprep.subr.mxu0 0.0
        %456 = vmatpush2.msra.mxu0 0.0
        %457 = vmatprep.subr.mxu0 0.0
        %458 = vmatpush2.msra.mxu0 0.0
        %459 = vmatprep.subr.mxu0 0.0
        %460 = vmatpush2.msra.mxu0 0.0
        %461 = vmatprep.subr.mxu0 0.0
        %462 = vmatpush2.msra.mxu0 0.0
        %463 = vmatprep.subr.mxu0 0.0
        %464 = vmatpush2.msra.mxu0 0.0
        %465 = vmatprep.subr.mxu0 0.0
        %466 = vmatpush2.msra.mxu0 0.0
        %467 = vmatprep.subr.mxu0 0.0
        %468 = vmatpush2.msra.mxu0 0.0
        %469 = vmatprep.subr.mxu0 0.0
        %470 = vmatpush2.msra.mxu0 0.0
        %471 = vmatprep.subr.mxu0 0.0
        %472 = vmatpush2.msra.mxu0 0.0
        %473 = vmatprep.subr.mxu0 0.0
        %474 = vmatpush2.msra.mxu0 0.0
        %475 = vmatprep.subr.mxu0 0.0
        %476 = vmatpush2.msra.mxu0 0.0
        %477 = vmatprep.subr.mxu0 0.0
        %478 = vmatpush2.msra.mxu0 0.0
        %479 = vmatprep.subr.mxu0 0.0
        %480 = vmatpush2.msra.mxu0 0.0
        %481 = vmatprep.subr.mxu0 0.0
        %482 = vmatpush2.msra.mxu0 0.0
        %483 = vmatprep.subr.mxu0 0.0
        %484 = vmatpush2.msra.mxu0 0.0
        %485 = vmatprep.subr.mxu0 0.0
        %486 = vmatpush2.msra.mxu0 0.0
        %487 = vmatprep.mubr.f32.mxu0 0.0
        %488 = vmatmul.mubr.f32.gmra.mxu0 %v414
        %v489 = vpop.f32.mrf.mxu0
        %v490 = vadd.f32 %v410, %v489
        %v491 = vpop.f32.mrf.mxu0
        %v492 = vadd.f32 %v410, %v491
        %493 = vdwg.mxu0
        %v494 = vld [vmem:[%s342] sm:$0xff]
        %v495 = vld [vmem:[%s7] sm:$0xff]
        %v496 = vmax.f32 %v494, 0.0
        %v497 = vld [vmem:[%s2] sm:$0xff]
        %499 = vset.pattern.permute.xlu0 0
        %500 = vperm.xlu0 %499, %v495
        %v501 = vpop.permute.xlu0 %500
        %v504 = vcombine.high %v496, %v496
        %vm505 = vcmask 31744
        %v507 = vsel %vm505, %v497, 0
        %vm509 = vcmask 1043456
        %v510 = vsel %vm509, %v496, 0
        %v512 = vsel %vm509, %v504, 0
        %514 = vmatprep.subr.mxu0 0.0
        %515 = vmatpush1.msra.mxu0 0.0
        %516 = vmatprep.subr.mxu0 0.0
        %517 = vmatpush1.msra.mxu0 0.0
        %518 = vmatprep.subr.mxu0 0.0
        %519 = vmatpush1.msra.mxu0 0.0
        %520 = vmatprep.subr.mxu0 0.0
        %521 = vmatpush1.msra.mxu0 0.0
        %522 = vmatprep.subr.mxu0 0.0
        %523 = vmatpush1.msra.mxu0 0.0
        %524 = vmatprep.subr.mxu0 0.0
        %525 = vmatpush1.msra.mxu0 0.0
        %526 = vmatprep.subr.mxu0 0.0
        %527 = vmatpush1.msra.mxu0 0.0
        %528 = vmatprep.subr.mxu0 0.0
        %529 = vmatpush1.msra.mxu0 0.0
        %530 = vmatprep.subr.mxu0 0.0
        %531 = vmatpush1.msra.mxu0 0.0
        %532 = vmatprep.subr.mxu0 0.0
        %533 = vmatpush1.msra.mxu0 0.0
        %534 = vmatprep.subr.mxu0 0.0
        %535 = vmatpush1.msra.mxu0 0.0
        %536 = vmatprep.subr.mxu0 0.0
        %537 = vmatpush1.msra.mxu0 0.0
        %538 = vmatprep.subr.mxu0 0.0
        %539 = vmatpush1.msra.mxu0 0.0
        %540 = vmatprep.subr.mxu0 0.0
        %541 = vmatpush1.msra.mxu0 0.0
        %542 = vmatprep.subr.mxu0 0.0
        %543 = vmatpush1.msra.mxu0 0.0
        %544 = vmatprep.subr.mxu0 %v512
        %545 = vmatpush1.msra.mxu0 %v510
        %546 = vmatprep.subr.mxu0 0.0
        %547 = vmatpush2.msra.mxu0 0.0
        %548 = vmatprep.subr.mxu0 0.0
        %549 = vmatpush2.msra.mxu0 0.0
        %550 = vmatprep.subr.mxu0 0.0
        %551 = vmatpush2.msra.mxu0 0.0
        %552 = vmatprep.subr.mxu0 0.0
        %553 = vmatpush2.msra.mxu0 0.0
        %554 = vmatprep.subr.mxu0 0.0
        %555 = vmatpush2.msra.mxu0 0.0
        %556 = vmatprep.subr.mxu0 0.0
        %557 = vmatpush2.msra.mxu0 0.0
        %558 = vmatprep.subr.mxu0 0.0
        %559 = vmatpush2.msra.mxu0 0.0
        %560 = vmatprep.subr.mxu0 0.0
        %561 = vmatpush2.msra.mxu0 0.0
        %562 = vmatprep.subr.mxu0 0.0
        %563 = vmatpush2.msra.mxu0 0.0
        %564 = vmatprep.subr.mxu0 0.0
        %565 = vmatpush2.msra.mxu0 0.0
        %566 = vmatprep.subr.mxu0 0.0
        %567 = vmatpush2.msra.mxu0 0.0
        %568 = vmatprep.subr.mxu0 0.0
        %569 = vmatpush2.msra.mxu0 0.0
        %570 = vmatprep.subr.mxu0 0.0
        %571 = vmatpush2.msra.mxu0 0.0
        %572 = vmatprep.subr.mxu0 0.0
        %573 = vmatpush2.msra.mxu0 0.0
        %574 = vmatprep.subr.mxu0 0.0
        %575 = vmatpush2.msra.mxu0 0.0
        %576 = vmatprep.subr.mxu0 0.0
        %577 = vmatpush2.msra.mxu0 0.0
        %578 = vmatprep.mubr.f32.mxu0 0.0
        %579 = vmatmul.mubr.f32.gmra.mxu0 %v507
        %v580 = vpop.f32.mrf.mxu0
        %v581 = vadd.f32 %v501, %v580
        %v582 = vpop.f32.mrf.mxu0
        %v583 = vadd.f32 %v501, %v582
        %584 = vdwg.mxu0
        %v585 = vmax.f32 %v581, 0.0
        %v586 = vmax.f32 %v583, 0.0
        %v587 = vld [vmem:[#allocation5] sm:$0xff]
        %v588 = vld [vmem:[#allocation5 + $0x8] sm:$0xff]
        %v589 = vld [vmem:[#allocation5 + $0x10] sm:$0xff]
        %v590 = vld [vmem:[#allocation5 + $0x18] sm:$0xff]
        %v591 = vld [vmem:[#allocation5 + $0x20] sm:$0xff]
        %v592 = vld [vmem:[#allocation5 + $0x28] sm:$0xff]
        %v593 = vld [vmem:[#allocation5 + $0x30] sm:$0xff]
        %v594 = vld [vmem:[#allocation5 + $0x38] sm:$0xff]
        %v595 = vld [vmem:[#allocation5 + $0x40] sm:$0xff]
        %v596 = vld [vmem:[#allocation5 + $0x48] sm:$0xff]
        %v597 = vld [vmem:[#allocation5 + $0x50] sm:$0xff]
        %v598 = vld [vmem:[#allocation5 + $0x58] sm:$0xff]
        %v599 = vld [vmem:[#allocation5 + $0x60] sm:$0xff]
        %v600 = vld [vmem:[#allocation5 + $0x68] sm:$0xff]
        %v601 = vld [vmem:[#allocation5 + $0x70] sm:$0xff]
        %v602 = vld [vmem:[#allocation5 + $0x78] sm:$0xff]
        %v603 = vld [vmem:[#allocation5 + $0x80] sm:$0xff]
        %v604 = vld [vmem:[#allocation5 + $0x88] sm:$0xff]
        %605 = vrot.lane.b32.xlu0 %v585, 17
        %v606 = vpop.permute.xlu0 %605
        %607 = vrot.lane.b32.xlu0 %v586, 17
        %v608 = vpop.permute.xlu0 %607
        %v609 = vlaneseq
        %v610 = vand.u32 %v609, 127
        %vm611 = vcmp.lt.s32.totalorder %v610, 17
        %v612 = vsel %vm611, %v606, %v608
        %v613 = vsel %vm611, %v608, %v606
        %v614 = vmul.f32 %v613, %v587
        %v615 = vmul.f32 %v612, %v588
        %v616 = vadd.f32 %v614, 0.0
        %v617 = vadd.f32 %v615, 0.0
        %618 = vrot.lane.b32.xlu0 %v585, 16
        %v619 = vpop.permute.xlu0 %618
        %620 = vrot.lane.b32.xlu0 %v586, 16
        %v621 = vpop.permute.xlu0 %620
        %vm622 = vcmp.lt.s32.totalorder %v610, 16
        %v623 = vsel %vm622, %v619, %v621
        %v624 = vsel %vm622, %v621, %v619
        %v625 = vmul.f32 %v624, %v589
        %v626 = vmul.f32 %v623, %v590
        %v627 = vadd.f32 %v616, %v625
        %v628 = vadd.f32 %v617, %v626
        %629 = vrot.lane.b32.xlu0 %v585, 15
        %v630 = vpop.permute.xlu0 %629
        %631 = vrot.lane.b32.xlu0 %v586, 15
        %v632 = vpop.permute.xlu0 %631
        %vm633 = vcmp.lt.s32.totalorder %v610, 15
        %v634 = vsel %vm633, %v630, %v632
        %v635 = vsel %vm633, %v632, %v630
        %v636 = vmul.f32 %v635, %v591
        %v637 = vmul.f32 %v634, %v592
        %v638 = vadd.f32 %v627, %v636
        %v639 = vadd.f32 %v628, %v637
        %640 = vrot.lane.b32.xlu0 %v585, 1
        %v641 = vpop.permute.xlu0 %640
        %642 = vrot.lane.b32.xlu0 %v586, 1
        %v643 = vpop.permute.xlu0 %642
        %vm644 = vcmp.lt.s32.totalorder %v610, 1
        %v645 = vsel %vm644, %v641, %v643
        %v646 = vsel %vm644, %v643, %v641
        %v647 = vmul.f32 %v646, %v593
        %v648 = vmul.f32 %v645, %v594
        %v649 = vadd.f32 %v638, %v647
        %v650 = vadd.f32 %v639, %v648
        %v651 = vmul.f32 %v585, %v595
        %v652 = vmul.f32 %v586, %v596
        %v653 = vadd.f32 %v649, %v651
        %v654 = vadd.f32 %v650, %v652
        %655 = vrot.lane.b32.xlu0 %v585, 127
        %v656 = vpop.permute.xlu0 %655
        %657 = vrot.lane.b32.xlu0 %v586, 127
        %v658 = vpop.permute.xlu0 %657
        %vm659 = vcmp.lt.s32.totalorder %v610, 127
        %v660 = vsel %vm659, %v656, %v658
        %v661 = vsel %vm659, %v658, %v656
        %v662 = vmul.f32 %v660, %v597
        %v663 = vmul.f32 %v661, %v598
        %v664 = vadd.f32 %v653, %v662
        %v665 = vadd.f32 %v654, %v663
        %666 = vrot.lane.b32.xlu0 %v585, 113
        %v667 = vpop.permute.xlu0 %666
        %668 = vrot.lane.b32.xlu0 %v586, 113
        %v669 = vpop.permute.xlu0 %668
        %vm670 = vcmp.lt.s32.totalorder %v610, 113
        %v671 = vsel %vm670, %v667, %v669
        %v672 = vsel %vm670, %v669, %v667
        %v673 = vmul.f32 %v671, %v599
        %v674 = vmul.f32 %v672, %v600
        %v675 = vadd.f32 %v664, %v673
        %v676 = vadd.f32 %v665, %v674
        %677 = vrot.lane.b32.xlu0 %v585, 112
        %v678 = vpop.permute.xlu0 %677
        %679 = vrot.lane.b32.xlu0 %v586, 112
        %v680 = vpop.permute.xlu0 %679
        %vm681 = vcmp.lt.s32.totalorder %v610, 112
        %v682 = vsel %vm681, %v678, %v680
        %v683 = vsel %vm681, %v680, %v678
        %v684 = vmul.f32 %v682, %v601
        %v685 = vmul.f32 %v683, %v602
        %v686 = vadd.f32 %v675, %v684
        %v687 = vadd.f32 %v676, %v685
        %688 = vrot.lane.b32.xlu0 %v585, 111
        %v689 = vpop.permute.xlu0 %688
        %690 = vrot.lane.b32.xlu0 %v586, 111
        %v691 = vpop.permute.xlu0 %690
        %vm692 = vcmp.lt.s32.totalorder %v610, 111
        %v693 = vsel %vm692, %v689, %v691
        %v694 = vsel %vm692, %v691, %v689
        %v695 = vmul.f32 %v693, %v603
        %v696 = vmul.f32 %v694, %v604
        %v697 = vadd.f32 %v686, %v695
        %v698 = vadd.f32 %v687, %v696
        %v699 = vld [vmem:[%s5] sm:$0xff]
        %s700 = scalar_lea.vmem %s7, 24
        %v701 = vld [vmem:[%s700] sm:$0xff]
        %703 = vset.pattern.permute.xlu0 0
        %704 = vperm.xlu0 %703, %v701
        %v705 = vpop.permute.xlu0 %704
        %vm707 = vcmask 64512
        %v709 = vsel %vm707, %v699, 0
        %711 = vmatprep.subr.mxu0 0.0
        %712 = vmatpush1.msra.mxu0 0.0
        %713 = vmatprep.subr.mxu0 0.0
        %714 = vmatpush1.msra.mxu0 0.0
        %715 = vmatprep.subr.mxu0 0.0
        %716 = vmatpush1.msra.mxu0 0.0
        %717 = vmatprep.subr.mxu0 0.0
        %718 = vmatpush1.msra.mxu0 0.0
        %719 = vmatprep.subr.mxu0 0.0
        %720 = vmatpush1.msra.mxu0 0.0
        %721 = vmatprep.subr.mxu0 0.0
        %722 = vmatpush1.msra.mxu0 0.0
        %723 = vmatprep.subr.mxu0 0.0
        %724 = vmatpush1.msra.mxu0 0.0
        %725 = vmatprep.subr.mxu0 0.0
        %726 = vmatpush1.msra.mxu0 0.0
        %727 = vmatprep.subr.mxu0 0.0
        %728 = vmatpush1.msra.mxu0 0.0
        %729 = vmatprep.subr.mxu0 0.0
        %730 = vmatpush1.msra.mxu0 0.0
        %731 = vmatprep.subr.mxu0 0.0
        %732 = vmatpush1.msra.mxu0 0.0
        %733 = vmatprep.subr.mxu0 0.0
        %734 = vmatpush1.msra.mxu0 0.0
        %735 = vmatprep.subr.mxu0 0.0
        %736 = vmatpush1.msra.mxu0 0.0
        %737 = vmatprep.subr.mxu0 0.0
        %738 = vmatpush1.msra.mxu0 0.0
        %739 = vmatprep.subr.mxu0 0.0
        %740 = vmatpush1.msra.mxu0 0.0
        %741 = vmatprep.subr.mxu0 %v698
        %742 = vmatpush1.msra.mxu0 %v697
        %743 = vmatprep.subr.mxu0 0.0
        %744 = vmatpush2.msra.mxu0 0.0
        %745 = vmatprep.subr.mxu0 0.0
        %746 = vmatpush2.msra.mxu0 0.0
        %747 = vmatprep.subr.mxu0 0.0
        %748 = vmatpush2.msra.mxu0 0.0
        %749 = vmatprep.subr.mxu0 0.0
        %750 = vmatpush2.msra.mxu0 0.0
        %751 = vmatprep.subr.mxu0 0.0
        %752 = vmatpush2.msra.mxu0 0.0
        %753 = vmatprep.subr.mxu0 0.0
        %754 = vmatpush2.msra.mxu0 0.0
        %755 = vmatprep.subr.mxu0 0.0
        %756 = vmatpush2.msra.mxu0 0.0
        %757 = vmatprep.subr.mxu0 0.0
        %758 = vmatpush2.msra.mxu0 0.0
        %759 = vmatprep.subr.mxu0 0.0
        %760 = vmatpush2.msra.mxu0 0.0
        %761 = vmatprep.subr.mxu0 0.0
        %762 = vmatpush2.msra.mxu0 0.0
        %763 = vmatprep.subr.mxu0 0.0
        %764 = vmatpush2.msra.mxu0 0.0
        %765 = vmatprep.subr.mxu0 0.0
        %766 = vmatpush2.msra.mxu0 0.0
        %767 = vmatprep.subr.mxu0 0.0
        %768 = vmatpush2.msra.mxu0 0.0
        %769 = vmatprep.subr.mxu0 0.0
        %770 = vmatpush2.msra.mxu0 0.0
        %771 = vmatprep.subr.mxu0 0.0
        %772 = vmatpush2.msra.mxu0 0.0
        %773 = vmatprep.subr.mxu0 0.0
        %774 = vmatpush2.msra.mxu0 0.0
        %775 = vmatprep.mubr.f32.mxu0 0.0
        %776 = vmatmul.mubr.f32.gmra.mxu0 %v709
        %v777 = vpop.f32.mrf.mxu0
        %v778 = vadd.f32 %v705, %v777
        %v779 = vpop.f32.mrf.mxu0
        %v780 = vadd.f32 %v705, %v779
        %781 = vdwg.mxu0
        %v782 = vadd.f32 %v778, %v490
        %v783 = vadd.f32 %v780, %v492
        %s784 = scalar_lea.vmem [#allocation5], 144
        %v785 = vld [vmem:[%s784] sm:$0xff]
        %v786 = vld [vmem:[%s784 + $0x8] sm:$0xff]
        %v787 = vld [vmem:[%s784 + $0x10] sm:$0xff]
        %v788 = vld [vmem:[%s784 + $0x18] sm:$0xff]
        %v789 = vld [vmem:[%s784 + $0x20] sm:$0xff]
        %v790 = vld [vmem:[%s784 + $0x28] sm:$0xff]
        %v791 = vld [vmem:[%s784 + $0x30] sm:$0xff]
        %v792 = vld [vmem:[%s784 + $0x38] sm:$0xff]
        %v793 = vld [vmem:[%s784 + $0x40] sm:$0xff]
        %v794 = vld [vmem:[%s784 + $0x48] sm:$0xff]
        %v795 = vld [vmem:[%s784 + $0x50] sm:$0xff]
        %v796 = vld [vmem:[%s784 + $0x58] sm:$0xff]
        %v797 = vld [vmem:[%s784 + $0x60] sm:$0xff]
        %v798 = vld [vmem:[%s784 + $0x68] sm:$0xff]
        %v799 = vld [vmem:[%s784 + $0x70] sm:$0xff]
        %v800 = vld [vmem:[%s784 + $0x78] sm:$0xff]
        %v801 = vld [vmem:[%s784 + $0x80] sm:$0xff]
        %v802 = vld [vmem:[%s784 + $0x88] sm:$0xff]
        %v803 = vmul.f32 %v613, %v785
        %v804 = vmul.f32 %v612, %v786
        %v805 = vadd.f32 %v803, 0.0
        %v806 = vadd.f32 %v804, 0.0
        %v807 = vmul.f32 %v624, %v787
        %v808 = vmul.f32 %v623, %v788
        %v809 = vadd.f32 %v805, %v807
        %v810 = vadd.f32 %v806, %v808
        %v811 = vmul.f32 %v635, %v789
        %v812 = vmul.f32 %v634, %v790
        %v813 = vadd.f32 %v809, %v811
        %v814 = vadd.f32 %v810, %v812
        %v815 = vmul.f32 %v646, %v791
        %v816 = vmul.f32 %v645, %v792
        %v817 = vadd.f32 %v813, %v815
        %v818 = vadd.f32 %v814, %v816
        %v819 = vmul.f32 %v585, %v793
        %v820 = vmul.f32 %v586, %v794
        %v821 = vadd.f32 %v817, %v819
        %v822 = vadd.f32 %v818, %v820
        %v823 = vmul.f32 %v660, %v795
        %v824 = vmul.f32 %v661, %v796
        %v825 = vadd.f32 %v821, %v823
        %v826 = vadd.f32 %v822, %v824
        %v827 = vmul.f32 %v671, %v797
        %v828 = vmul.f32 %v672, %v798
        %v829 = vadd.f32 %v825, %v827
        %v830 = vadd.f32 %v826, %v828
        %v831 = vmul.f32 %v682, %v799
        %v832 = vmul.f32 %v683, %v800
        %v833 = vadd.f32 %v829, %v831
        %v834 = vadd.f32 %v830, %v832
        %v835 = vmul.f32 %v693, %v801
        %v836 = vmul.f32 %v694, %v802
        %v837 = vadd.f32 %v833, %v835
        %v838 = vadd.f32 %v834, %v836
        %s839 = scalar_lea.vmem %s5, 8
        %v840 = vld [vmem:[%s839] sm:$0xff]
        %s841 = scalar_lea.vmem %s7, 32
        %v842 = vld [vmem:[%s841] sm:$0xff]
        %844 = vset.pattern.permute.xlu0 0
        %845 = vperm.xlu0 %844, %v842
        %v846 = vpop.permute.xlu0 %845
        %v849 = vsel %vm707, %v840, 0
        %851 = vmatprep.subr.mxu0 0.0
        %852 = vmatpush1.msra.mxu0 0.0
        %853 = vmatprep.subr.mxu0 0.0
        %854 = vmatpush1.msra.mxu0 0.0
        %855 = vmatprep.subr.mxu0 0.0
        %856 = vmatpush1.msra.mxu0 0.0
        %857 = vmatprep.subr.mxu0 0.0
        %858 = vmatpush1.msra.mxu0 0.0
        %859 = vmatprep.subr.mxu0 0.0
        %860 = vmatpush1.msra.mxu0 0.0
        %861 = vmatprep.subr.mxu0 0.0
        %862 = vmatpush1.msra.mxu0 0.0
        %863 = vmatprep.subr.mxu0 0.0
        %864 = vmatpush1.msra.mxu0 0.0
        %865 = vmatprep.subr.mxu0 0.0
        %866 = vmatpush1.msra.mxu0 0.0
        %867 = vmatprep.subr.mxu0 0.0
        %868 = vmatpush1.msra.mxu0 0.0
        %869 = vmatprep.subr.mxu0 0.0
        %870 = vmatpush1.msra.mxu0 0.0
        %871 = vmatprep.subr.mxu0 0.0
        %872 = vmatpush1.msra.mxu0 0.0
        %873 = vmatprep.subr.mxu0 0.0
        %874 = vmatpush1.msra.mxu0 0.0
        %875 = vmatprep.subr.mxu0 0.0
        %876 = vmatpush1.msra.mxu0 0.0
        %877 = vmatprep.subr.mxu0 0.0
        %878 = vmatpush1.msra.mxu0 0.0
        %879 = vmatprep.subr.mxu0 0.0
        %880 = vmatpush1.msra.mxu0 0.0
        %881 = vmatprep.subr.mxu0 %v838
        %882 = vmatpush1.msra.mxu0 %v837
        %883 = vmatprep.subr.mxu0 0.0
        %884 = vmatpush2.msra.mxu0 0.0
        %885 = vmatprep.subr.mxu0 0.0
        %886 = vmatpush2.msra.mxu0 0.0
        %887 = vmatprep.subr.mxu0 0.0
        %888 = vmatpush2.msra.mxu0 0.0
        %889 = vmatprep.subr.mxu0 0.0
        %890 = vmatpush2.msra.mxu0 0.0
        %891 = vmatprep.subr.mxu0 0.0
        %892 = vmatpush2.msra.mxu0 0.0
        %893 = vmatprep.subr.mxu0 0.0
        %894 = vmatpush2.msra.mxu0 0.0
        %895 = vmatprep.subr.mxu0 0.0
        %896 = vmatpush2.msra.mxu0 0.0
        %897 = vmatprep.subr.mxu0 0.0
        %898 = vmatpush2.msra.mxu0 0.0
        %899 = vmatprep.subr.mxu0 0.0
        %900 = vmatpush2.msra.mxu0 0.0
        %901 = vmatprep.subr.mxu0 0.0
        %902 = vmatpush2.msra.mxu0 0.0
        %903 = vmatprep.subr.mxu0 0.0
        %904 = vmatpush2.msra.mxu0 0.0
        %905 = vmatprep.subr.mxu0 0.0
        %906 = vmatpush2.msra.mxu0 0.0
        %907 = vmatprep.subr.mxu0 0.0
        %908 = vmatpush2.msra.mxu0 0.0
        %909 = vmatprep.subr.mxu0 0.0
        %910 = vmatpush2.msra.mxu0 0.0
        %911 = vmatprep.subr.mxu0 0.0
        %912 = vmatpush2.msra.mxu0 0.0
        %913 = vmatprep.subr.mxu0 0.0
        %914 = vmatpush2.msra.mxu0 0.0
        %915 = vmatprep.mubr.f32.mxu0 0.0
        %916 = vmatmul.mubr.f32.gmra.mxu0 %v849
        %v917 = vpop.f32.mrf.mxu0
        %v918 = vadd.f32 %v846, %v917
        %v919 = vpop.f32.mrf.mxu0
        %v920 = vadd.f32 %v846, %v919
        %921 = vdwg.mxu0
        %v922 = vadd.f32 %v918, %v490
        %v923 = vadd.f32 %v920, %v492
        %s924 = scalar_lea.vmem [#allocation5], 288
        %v925 = vld [vmem:[%s924] sm:$0xff]
        %v926 = vld [vmem:[%s924 + $0x8] sm:$0xff]
        %v927 = vld [vmem:[%s924 + $0x10] sm:$0xff]
        %v928 = vld [vmem:[%s924 + $0x18] sm:$0xff]
        %v929 = vld [vmem:[%s924 + $0x20] sm:$0xff]
        %v930 = vld [vmem:[%s924 + $0x28] sm:$0xff]
        %v931 = vld [vmem:[%s924 + $0x30] sm:$0xff]
        %v932 = vld [vmem:[%s924 + $0x38] sm:$0xff]
        %v933 = vld [vmem:[%s924 + $0x40] sm:$0xff]
        %v934 = vld [vmem:[%s924 + $0x48] sm:$0xff]
        %v935 = vld [vmem:[%s924 + $0x50] sm:$0xff]
        %v936 = vld [vmem:[%s924 + $0x58] sm:$0xff]
        %v937 = vld [vmem:[%s924 + $0x60] sm:$0xff]
        %v938 = vld [vmem:[%s924 + $0x68] sm:$0xff]
        %v939 = vld [vmem:[%s924 + $0x70] sm:$0xff]
        %v940 = vld [vmem:[%s924 + $0x78] sm:$0xff]
        %v941 = vld [vmem:[%s924 + $0x80] sm:$0xff]
        %v942 = vld [vmem:[%s924 + $0x88] sm:$0xff]
        %v943 = vmul.f32 %v613, %v925
        %v944 = vmul.f32 %v612, %v926
        %v945 = vadd.f32 %v943, 0.0
        %v946 = vadd.f32 %v944, 0.0
        %v947 = vmul.f32 %v624, %v927
        %v948 = vmul.f32 %v623, %v928
        %v949 = vadd.f32 %v945, %v947
        %v950 = vadd.f32 %v946, %v948
        %v951 = vmul.f32 %v635, %v929
        %v952 = vmul.f32 %v634, %v930
        %v953 = vadd.f32 %v949, %v951
        %v954 = vadd.f32 %v950, %v952
        %v955 = vmul.f32 %v646, %v931
        %v956 = vmul.f32 %v645, %v932
        %v957 = vadd.f32 %v953, %v955
        %v958 = vadd.f32 %v954, %v956
        %v959 = vmul.f32 %v585, %v933
        %v960 = vmul.f32 %v586, %v934
        %v961 = vadd.f32 %v957, %v959
        %v962 = vadd.f32 %v958, %v960
        %v963 = vmul.f32 %v660, %v935
        %v964 = vmul.f32 %v661, %v936
        %v965 = vadd.f32 %v961, %v963
        %v966 = vadd.f32 %v962, %v964
        %v967 = vmul.f32 %v671, %v937
        %v968 = vmul.f32 %v672, %v938
        %v969 = vadd.f32 %v965, %v967
        %v970 = vadd.f32 %v966, %v968
        %v971 = vmul.f32 %v682, %v939
        %v972 = vmul.f32 %v683, %v940
        %v973 = vadd.f32 %v969, %v971
        %v974 = vadd.f32 %v970, %v972
        %v975 = vmul.f32 %v693, %v941
        %v976 = vmul.f32 %v694, %v942
        %v977 = vadd.f32 %v973, %v975
        %v978 = vadd.f32 %v974, %v976
        %s979 = scalar_lea.vmem %s5, 16
        %v980 = vld [vmem:[%s979] sm:$0xff]
        %s981 = scalar_lea.vmem %s7, 40
        %v982 = vld [vmem:[%s981] sm:$0xff]
        %984 = vset.pattern.permute.xlu0 0
        %985 = vperm.xlu0 %984, %v982
        %v986 = vpop.permute.xlu0 %985
        %v989 = vsel %vm707, %v980, 0
        %991 = vmatprep.subr.mxu0 0.0
        %992 = vmatpush1.msra.mxu0 0.0
        %993 = vmatprep.subr.mxu0 0.0
        %994 = vmatpush1.msra.mxu0 0.0
        %995 = vmatprep.subr.mxu0 0.0
        %996 = vmatpush1.msra.mxu0 0.0
        %997 = vmatprep.subr.mxu0 0.0
        %998 = vmatpush1.msra.mxu0 0.0
        %999 = vmatprep.subr.mxu0 0.0
        %1000 = vmatpush1.msra.mxu0 0.0
        %1001 = vmatprep.subr.mxu0 0.0
        %1002 = vmatpush1.msra.mxu0 0.0
        %1003 = vmatprep.subr.mxu0 0.0
        %1004 = vmatpush1.msra.mxu0 0.0
        %1005 = vmatprep.subr.mxu0 0.0
        %1006 = vmatpush1.msra.mxu0 0.0
        %1007 = vmatprep.subr.mxu0 0.0
        %1008 = vmatpush1.msra.mxu0 0.0
        %1009 = vmatprep.subr.mxu0 0.0
        %1010 = vmatpush1.msra.mxu0 0.0
        %1011 = vmatprep.subr.mxu0 0.0
        %1012 = vmatpush1.msra.mxu0 0.0
        %1013 = vmatprep.subr.mxu0 0.0
        %1014 = vmatpush1.msra.mxu0 0.0
        %1015 = vmatprep.subr.mxu0 0.0
        %1016 = vmatpush1.msra.mxu0 0.0
        %1017 = vmatprep.subr.mxu0 0.0
        %1018 = vmatpush1.msra.mxu0 0.0
        %1019 = vmatprep.subr.mxu0 0.0
        %1020 = vmatpush1.msra.mxu0 0.0
        %1021 = vmatprep.subr.mxu0 %v978
        %1022 = vmatpush1.msra.mxu0 %v977
        %1023 = vmatprep.subr.mxu0 0.0
        %1024 = vmatpush2.msra.mxu0 0.0
        %1025 = vmatprep.subr.mxu0 0.0
        %1026 = vmatpush2.msra.mxu0 0.0
        %1027 = vmatprep.subr.mxu0 0.0
        %1028 = vmatpush2.msra.mxu0 0.0
        %1029 = vmatprep.subr.mxu0 0.0
        %1030 = vmatpush2.msra.mxu0 0.0
        %1031 = vmatprep.subr.mxu0 0.0
        %1032 = vmatpush2.msra.mxu0 0.0
        %1033 = vmatprep.subr.mxu0 0.0
        %1034 = vmatpush2.msra.mxu0 0.0
        %1035 = vmatprep.subr.mxu0 0.0
        %1036 = vmatpush2.msra.mxu0 0.0
        %1037 = vmatprep.subr.mxu0 0.0
        %1038 = vmatpush2.msra.mxu0 0.0
        %1039 = vmatprep.subr.mxu0 0.0
        %1040 = vmatpush2.msra.mxu0 0.0
        %1041 = vmatprep.subr.mxu0 0.0
        %1042 = vmatpush2.msra.mxu0 0.0
        %1043 = vmatprep.subr.mxu0 0.0
        %1044 = vmatpush2.msra.mxu0 0.0
        %1045 = vmatprep.subr.mxu0 0.0
        %1046 = vmatpush2.msra.mxu0 0.0
        %1047 = vmatprep.subr.mxu0 0.0
        %1048 = vmatpush2.msra.mxu0 0.0
        %1049 = vmatprep.subr.mxu0 0.0
        %1050 = vmatpush2.msra.mxu0 0.0
        %1051 = vmatprep.subr.mxu0 0.0
        %1052 = vmatpush2.msra.mxu0 0.0
        %1053 = vmatprep.subr.mxu0 0.0
        %1054 = vmatpush2.msra.mxu0 0.0
        %1055 = vmatprep.mubr.f32.mxu0 0.0
        %1056 = vmatmul.mubr.f32.gmra.mxu0 %v989
        %v1057 = vpop.f32.mrf.mxu0
        %v1058 = vadd.f32 %v986, %v1057
        %v1059 = vpop.f32.mrf.mxu0
        %v1060 = vadd.f32 %v986, %v1059
        %1061 = vdwg.mxu0
        %v1062 = vadd.f32 %v1058, %v490
        %v1063 = vadd.f32 %v1060, %v492
        %1064 = vst [vmem:[%s383] sm:$0xff] %v782
        %1065 = vst [vmem:[%s383 + $0x8] sm:$0xff] %v783
        %1066 = vst [vmem:[%s383 + $0x10] sm:$0xff] %v922
        %1067 = vst [vmem:[%s383 + $0x18] sm:$0xff] %v923
        %1068 = vst [vmem:[%s383 + $0x20] sm:$0xff] %v1062
        %1069 = vst [vmem:[%s383 + $0x28] sm:$0xff] %v1063
        %v1070 = vld [vmem:[%s6] sm:$0xff]
        %v1071 = vmax.f32 %v782, 0.0
        %v1072 = vmax.f32 %v783, 0.0
        %v1073 = vmax.f32 %v922, 0.0
        %v1074 = vmax.f32 %v923, 0.0
        %v1075 = vmax.f32 %v1062, 0.0
        %v1076 = vmax.f32 %v1063, 0.0
        %s1077 = scalar_lea.vmem %s7, 16
        %v1078 = vld [vmem:[%s1077] sm:$0xff]
        %1080 = vset.pattern.permute.xlu0 0
        %1081 = vperm.xlu0 %1080, %v1078
        %v1082 = vpop.permute.xlu0 %1081
        %vm1084 = vcmask 195584
        %v1086 = vsel %vm1084, %v1070, 0
        %1088 = vmatprep.subr.mxu0 0.0
        %1089 = vmatpush1.msra.mxu0 0.0
        %1090 = vmatprep.subr.mxu0 0.0
        %1091 = vmatpush1.msra.mxu0 0.0
        %1092 = vmatprep.subr.mxu0 0.0
        %1093 = vmatpush1.msra.mxu0 0.0
        %1094 = vmatprep.subr.mxu0 0.0
        %1095 = vmatpush1.msra.mxu0 0.0
        %1096 = vmatprep.subr.mxu0 0.0
        %1097 = vmatpush1.msra.mxu0 0.0
        %1098 = vmatprep.subr.mxu0 0.0
        %1099 = vmatpush1.msra.mxu0 0.0
        %1100 = vmatprep.subr.mxu0 0.0
        %1101 = vmatpush1.msra.mxu0 0.0
        %1102 = vmatprep.subr.mxu0 0.0
        %1103 = vmatpush1.msra.mxu0 0.0
        %1104 = vmatprep.subr.mxu0 0.0
        %1105 = vmatpush1.msra.mxu0 0.0
        %1106 = vmatprep.subr.mxu0 0.0
        %1107 = vmatpush1.msra.mxu0 0.0
        %1108 = vmatprep.subr.mxu0 0.0
        %1109 = vmatpush1.msra.mxu0 0.0
        %1110 = vmatprep.subr.mxu0 0.0
        %1111 = vmatpush1.msra.mxu0 0.0
        %1112 = vmatprep.subr.mxu0 0.0
        %1113 = vmatpush1.msra.mxu0 0.0
        %1114 = vmatprep.subr.mxu0 %v1076
        %1115 = vmatpush1.msra.mxu0 %v1075
        %1116 = vmatprep.subr.mxu0 %v1074
        %1117 = vmatpush1.msra.mxu0 %v1073
        %1118 = vmatprep.subr.mxu0 %v1072
        %1119 = vmatpush1.msra.mxu0 %v1071
        %1120 = vmatprep.subr.mxu0 0.0
        %1121 = vmatpush2.msra.mxu0 0.0
        %1122 = vmatprep.subr.mxu0 0.0
        %1123 = vmatpush2.msra.mxu0 0.0
        %1124 = vmatprep.subr.mxu0 0.0
        %1125 = vmatpush2.msra.mxu0 0.0
        %1126 = vmatprep.subr.mxu0 0.0
        %1127 = vmatpush2.msra.mxu0 0.0
        %1128 = vmatprep.subr.mxu0 0.0
        %1129 = vmatpush2.msra.mxu0 0.0
        %1130 = vmatprep.subr.mxu0 0.0
        %1131 = vmatpush2.msra.mxu0 0.0
        %1132 = vmatprep.subr.mxu0 0.0
        %1133 = vmatpush2.msra.mxu0 0.0
        %1134 = vmatprep.subr.mxu0 0.0
        %1135 = vmatpush2.msra.mxu0 0.0
        %1136 = vmatprep.subr.mxu0 0.0
        %1137 = vmatpush2.msra.mxu0 0.0
        %1138 = vmatprep.subr.mxu0 0.0
        %1139 = vmatpush2.msra.mxu0 0.0
        %1140 = vmatprep.subr.mxu0 0.0
        %1141 = vmatpush2.msra.mxu0 0.0
        %1142 = vmatprep.subr.mxu0 0.0
        %1143 = vmatpush2.msra.mxu0 0.0
        %1144 = vmatprep.subr.mxu0 0.0
        %1145 = vmatpush2.msra.mxu0 0.0
        %1146 = vmatprep.subr.mxu0 0.0
        %1147 = vmatpush2.msra.mxu0 0.0
        %1148 = vmatprep.subr.mxu0 0.0
        %1149 = vmatpush2.msra.mxu0 0.0
        %1150 = vmatprep.subr.mxu0 0.0
        %1151 = vmatpush2.msra.mxu0 0.0
        %1152 = vmatprep.mubr.f32.mxu0 0.0
        %1153 = vmatmul.mubr.f32.gmra.mxu0 %v1086
        %v1154 = vpop.f32.mrf.mxu0
        %v1155 = vadd.f32 %v1082, %v1154
        %v1156 = vpop.f32.mrf.mxu0
        %v1157 = vadd.f32 %v1082, %v1156
        %1158 = vdwg.mxu0
        %1159 = vst [vmem:[%s390] sm:$0xff] %v1155
        %1160 = vst [vmem:[%s390 + $0x8] sm:$0xff] %v1157
        %s1161 = sand.u32 %s217, 1
        %s1162 = scalar_lea.sflag [#allocation4], %s1161
        %s1163 = sand.u32 %s217, 1
        %s1164 = smul.addr %s1163, 48
        %s1165 = scalar_lea.vmem [#allocation7], %s1164
        %s1166 = sand.u32 %s243, 1
        %s1167 = scalar_lea.sflag [#allocation9], %s1166
        %s1168 = sand.u32 %s243, 1
        %s1169 = smul.addr %s1168, 16
        %s1170 = scalar_lea.vmem [#allocation8], %s1169
        // Predicated region
        $region61: #{tpu_custom_call.1} parent=51 // pred_check
          %p1171 = pneg %p227
        $region62: #{tpu_custom_call.1} parent=51 // pred_check_branch
          %1173 = sbr.rel (%p1171) target = $region64
        $region63: #{tpu_custom_call.1} parent=51 // pred_region
          %s1174 = smul.u32 2, %s31
          %s1176 = ssub.s32 768, 768
          %1177 = vsyncadd %s1162, %s1176
          %s1178 = smul.addr %s1174, 128
          %s1179 = scalar_lea.hbm %s8, %s1178
          %s1180 = sshll.u32 %s1165, 4
          %s1181 = int_to_ptr.vmem [resolvable:$true] %s1180
          %1186 = dma.vmem_to_hbm [thread:$0]  %s1181, 768, %s1179, %s1162, 256, 512, 16
        $region64: #{tpu_custom_call.1} parent=51 // pred_fallthru
          _
        // Predicated region
        $region65: #{tpu_custom_call.1} parent=51 // pred_check
          %p1187 = pneg %p253
        $region66: #{tpu_custom_call.1} parent=51 // pred_check_branch
          %1189 = sbr.rel (%p1187) target = $region68
        $region67: #{tpu_custom_call.1} parent=51 // pred_region
          %s1190 = smul.u32 2, %s31
          %s1192 = ssub.s32 256, 256
          %1193 = vsyncadd %s1167, %s1192
          %s1194 = smul.addr %s1190, 128
          %s1195 = scalar_lea.hbm %s9, %s1194
          %s1197 = sshll.u32 %s1170, 4
          %s1198 = int_to_ptr.vmem [resolvable:$true] %s1197
          %1200 = dma.vmem_to_hbm [thread:$0]  %s1198, 256, %s1195, %s1167
        $region68: #{tpu_custom_call.1} parent=51 // pred_fallthru
          _
      $region52: #{tpu_custom_call.1} parent=5 // pred_fallthru
        _
      %p1201 = scmp.le.s32.totalorder 2, %s26
      // Predicated region
      $region69: #{tpu_custom_call.1} parent=5 // pred_check
        %p1202 = pneg %p1201
      $region70: #{tpu_custom_call.1} parent=5 // pred_check_branch
        %1204 = sbr.rel (%p1202) target = $region72
      $region71: #{tpu_custom_call.1} parent=5 // pred_region
        %s1205 = ssub.s32 %s26, 2
        // Predicated region
        $region73: #{tpu_custom_call.1} parent=71 // pred_check
          %p1206 = pneg %p233
        $region74: #{tpu_custom_call.1} parent=71 // pred_check_branch
          %1208 = sbr.rel (%p1206) target = $region76
        $region75: #{tpu_custom_call.1} parent=71 // pred_region
          %s1209 = sand.u32 %s218, 1
          %s1210 = scalar_lea.sflag [#allocation4], %s1209
          %s1211 = sand.u32 %s218, 1
          %s1212 = smul.addr %s1211, 48
          %s1213 = scalar_lea.vmem [#allocation7], %s1212
          %1214 = dma.done %s1210, 768
        $region76: #{tpu_custom_call.1} parent=71 // pred_fallthru
          _
        // Predicated region
        $region77: #{tpu_custom_call.1} parent=71 // pred_check
          %p1215 = pneg %p259
        $region78: #{tpu_custom_call.1} parent=71 // pred_check_branch
          %1217 = sbr.rel (%p1215) target = $region80
        $region79: #{tpu_custom_call.1} parent=71 // pred_region
          %s1218 = sand.u32 %s244, 1
          %s1219 = scalar_lea.sflag [#allocation9], %s1218
          %s1220 = sand.u32 %s244, 1
          %s1221 = smul.addr %s1220, 16
          %s1222 = scalar_lea.vmem [#allocation8], %s1221
          %1223 = dma.done %s1219, 256
        $region80: #{tpu_custom_call.1} parent=71 // pred_fallthru
          _
      $region72: #{tpu_custom_call.1} parent=5 // pred_fallthru
        _
    $region6: #{tpu_custom_call.1} parent=1 // loop_footer
      %s30 = sadd.s32 1, %s26
    $region7: #{tpu_custom_call.1} parent=1 // loop_footer_branch
      %25 = sbr.rel target = $region3
    $region8: #{tpu_custom_call.1} parent=1 // loop_exit
      _
    %1224 = vsyncpa [#allocation3], 1
    %s1225 = scalar_lea.sflag [#allocation3], 1
    %1226 = vsyncpa %s1225, 1
    %1227 = vsyncpa [#allocation6], 1
    %1228 = vsyncpa [#allocation4], 1
    %s1229 = scalar_lea.sflag [#allocation4], 1
    %1230 = vsyncpa %s1229, 1
    %1231 = vsyncpa [#allocation9], 1
    %s1232 = scalar_lea.sflag [#allocation9], 1
    %1233 = vsyncpa %s1232, 1

</llo_original>
